<compile_context>
chip_gen: v7x
topology: tpu7x:2x2x1
jax: 0.10.0
libtpu: 0.0.40
codegen_flags: <defaults>
</compile_context>

<pallas_src>
import functools

import jax
import jax.numpy as jnp
from jax.experimental import pallas as pl
from jax.experimental.pallas import tpu as pltpu


_LANES = 128  # lane-dense output block width


def _topk_mask(x, k, f_idx, idx_sentinel):
    """Boolean (Bt, E) mask of the k smallest entries per row.

    Exact stable-argsort semantics: ties broken by lower feature index.
    k passes; each pass = 1 VPU select, 1 XLU lane-min (value), 1 VPU compare,
    1 XLU lane-min (first index), 1 VPU compare, 1 mask-or.
    """
    inf = jnp.float32(jnp.inf)
    sel = None
    for _ in range(k):
        masked = x if sel is None else jnp.where(sel, inf, x)
        m = jnp.min(masked, axis=1, keepdims=True)              # (Bt, 1)
        cand = jnp.where(masked == m, f_idx, idx_sentinel)      # (Bt, E)
        first = jnp.min(cand, axis=1, keepdims=True)            # (Bt, 1)
        hit = f_idx == first                                    # exactly one/row
        sel = hit if sel is None else (sel | hit)
    return sel


def _apsyn_kernel(emb_ref, wrd_ref, out_ref, *, top_features, power,
                  total_batch, batch_tile, mask_rows):
    # Block layout: (Bt, E) f32; feature (E) on lanes, batch (Bt) on sublanes.
    e = emb_ref[...].astype(jnp.float32)     # (Bt, E)
    w = wrd_ref[...].astype(jnp.float32)     # (Bt, E)
    Bt, E = e.shape

    # Hoisted f32 feature-index iota (int iota + convert; exact for E < 2^24).
    f_idx = jax.lax.broadcasted_iota(jnp.int32, (Bt, E), 1).astype(jnp.float32)
    idx_sentinel = jnp.float32(E)

    # Two independent O(k*E) selection chains (e and w); scheduler interleaves
    # them so XLU reduce latency of one hides under VPU work of the other.
    sel_e = _topk_mask(e, top_features, f_idx, idx_sentinel)
    sel_w = _topk_mask(w, top_features, f_idx, idx_sentinel)
    inter = sel_e & sel_w

    if mask_rows:
        # Exclude padded batch rows (only generated when B is not a multiple
        # of the batch tile).  Padded rows hold 1.0 (finite, pow-safe).
        row = (jax.lax.broadcasted_iota(jnp.int32, (Bt, E), 0)
               + pl.program_id(0) * batch_tile)
        inter = inter & (row < total_batch)

    # EUP transcendentals; computed once per batch tile, overlapped with the
    # VPU/XLU selection work above (separate issue slots).
    contrib = 2.0 / (jnp.power(e, power) + jnp.power(w, power))
    partial = jnp.sum(jnp.where(inter, contrib, jnp.float32(0.0)))

    # Lane-dense partial-sum output block (avoids masked sub-128 stores).
    out_ref[...] = jnp.broadcast_to(partial, (8, _LANES)).astype(jnp.float32)


def _round_up(x, m):
    return ((x + m - 1) // m) * m


def apsyn_power(emb_row, wrd_row, *, top_features=20, power=0.1,
                embed_size=200, batch_tile=128):
    """Pallas wrapper. emb_row / wrd_row: (batch, embed_size) float32, > 0."""
    B, E = emb_row.shape
    assert E == embed_size, (E, embed_size)
    assert 0 < top_features <= embed_size, (top_features, embed_size)
    emb_row = emb_row.astype(jnp.float32)
    wrd_row = wrd_row.astype(jnp.float32)

    if B < 16 and B <= batch_tile:
        # Tiny batch: single tile, block shape == full array dims.
        Bt, Bp = B, B
    else:
        # At least two grid steps so both v7x TensorCores get work; cap the
        # tile at `batch_tile` (sublane-aligned).  VMEM per tile is tiny now
        # (no 3-D intermediates), so 128 is safe on v5e/v6e/v7x.
        half = _round_up(-(-B // 2), 8)
        Bt = max(8, (min(batch_tile, half) // 8) * 8)
        Bp = _round_up(B, Bt)
        if Bp != B:                      # pad batch rows; masked inside kernel
            emb_row = jnp.pad(emb_row, ((0, Bp - B), (0, 0)), constant_values=1.0)
            wrd_row = jnp.pad(wrd_row, ((0, Bp - B), (0, 0)), constant_values=1.0)
    grid_b = Bp // Bt
    mask_rows = (Bp != B)

    kernel = functools.partial(
        _apsyn_kernel, top_features=top_features, power=power,
        total_batch=B, batch_tile=Bt, mask_rows=mask_rows)

    out = pl.pallas_call(
        kernel,
        out_shape=jax.ShapeDtypeStruct((8, _LANES * grid_b), jnp.float32),
        grid=(grid_b,),
        in_specs=[
            pl.BlockSpec((Bt, E), lambda g: (g, 0)),
            pl.BlockSpec((Bt, E), lambda g: (g, 0)),
        ],
        out_specs=pl.BlockSpec((8, _LANES), lambda g: (0, g)),
        compiler_params=pltpu.CompilerParams(
            dimension_semantics=("parallel",)),
    )(emb_row, wrd_row)

    # One partial per batch tile lives at out[0, g*128]; reduce to the score.
    return jnp.sum(out[0, ::_LANES])


def apsyn_ref(emb_row, wrd_row, *, top_features=20, power=0.1):
    """Pure-JAX reference of the intended semantics (stable argsort based)."""
    B, E = emb_row.shape
    top_e = jnp.argsort(emb_row, axis=1)[:, :top_features]
    top_w = jnp.argsort(wrd_row, axis=1)[:, :top_features]
    rows = jnp.arange(B)[:, None]
    mask_e = jnp.zeros((B, E), bool).at[rows, top_e].set(True)
    mask_w = jnp.zeros((B, E), bool).at[rows, top_w].set(True)
    inter = mask_e & mask_w
    contrib = 2.0 / (jnp.power(emb_row, power) + jnp.power(wrd_row, power))
    return jnp.sum(jnp.where(inter, contrib, 0.0))


if __name__ == "__main__":
    T, P, E = 20, 0.1, 200   # module defaults: top_features=20, power=0.1, embed_size=200
    key = jax.random.PRNGKey(0)
    k1, k2, k3, k4, k5, k6 = jax.random.split(key, 6)

    # Module-scale test: batch=2, embed_size=200. Positive inputs (fractional
    # powers of distance-like values).
    emb = jax.random.uniform(k1, (2, E), jnp.float32, minval=0.01, maxval=1.0)
    wrd = jax.random.uniform(k2, (2, E), jnp.float32, minval=0.01, maxval=1.0)
    out = jax.block_until_ready(
        apsyn_power(emb, wrd, top_features=T, power=P, embed_size=E))
    ref = apsyn_ref(emb, wrd, top_features=T, power=P)
    assert jnp.allclose(out, ref, rtol=2e-3, atol=1e-3), (out, ref)

    # Batch-tiled path with padding + masked rows (grid of 2, 6 padded rows).
    emb2 = jax.random.uniform(k3, (10, E), jnp.float32, minval=0.01, maxval=1.0)
    wrd2 = jax.random.uniform(k4, (10, E), jnp.float32, minval=0.01, maxval=1.0)
    out2 = jax.block_until_ready(
        apsyn_power(emb2, wrd2, top_features=T, power=P, embed_size=E, batch_tile=8))
    ref2 = apsyn_ref(emb2, wrd2, top_features=T, power=P)
    assert jnp.allclose(out2, ref2, rtol=2e-3, atol=1e-3), (out2, ref2)

    # B >= 16 path: automatically split into >= 2 grid steps (both v7x TCs).
    emb3 = jax.random.uniform(k5, (16, E), jnp.float32, minval=0.01, maxval=1.0)
    wrd3 = jax.random.uniform(k6, (16, E), jnp.float32, minval=0.01, maxval=1.0)
    out3 = jax.block_until_ready(
        apsyn_power(emb3, wrd3, top_features=T, power=P, embed_size=E))
    ref3 = apsyn_ref(emb3, wrd3, top_features=T, power=P)
    assert jnp.allclose(out3, ref3, rtol=2e-3, atol=1e-3), (out3, ref3)

    print("KERNEL_OK")
</pallas_src>

<mosaic_0001>
module attributes {stable_mosaic.version = 11 : i64} {
  func.func @_apsyn_kernel(%arg0: i32, %arg1: memref<2x200xf32, #tpu.memory_space<vmem>>, %arg2: memref<2x200xf32, #tpu.memory_space<vmem>>, %arg3: memref<8x128xf32, #tpu.memory_space<vmem>>) attributes {dimension_semantics = [#tpu.dimension_semantics<parallel>], iteration_bounds = array<i64: 1>, scalar_prefetch = 0 : i64, scratch_operands = 0 : i64, tpu.core_type = #tpu.core_type<tc>, window_params = [{transform_indices = @transform_0, window_bounds = array<i64: 2, 200>}, {transform_indices = @transform_1, window_bounds = array<i64: 2, 200>}, {transform_indices = @transform_2, window_bounds = array<i64: 8, 128>}]} {
    %c0 = arith.constant 0 : index
    %c0_0 = arith.constant 0 : index
    %0 = vector.load %arg1[%c0, %c0_0] : memref<2x200xf32, #tpu.memory_space<vmem>>, vector<2x200xf32>
    %c0_1 = arith.constant 0 : index
    %c0_2 = arith.constant 0 : index
    %1 = vector.load %arg2[%c0_1, %c0_2] : memref<2x200xf32, #tpu.memory_space<vmem>>, vector<2x200xf32>
    %2 = tpu.iota {dimensions = array<i32: 1>} : vector<2x200xi32>
    %3 = arith.sitofp %2 : vector<2x200xi32> to vector<2x200xf32>
    %cst = arith.constant dense<0x7F800000> : vector<2xf32>
    %4 = vector.multi_reduction <minimumf>, %0, %cst [1] : vector<2x200xf32> to vector<2xf32>
    %5 = vector.shape_cast %4 : vector<2xf32> to vector<2x1xf32>
    %6 = vector.broadcast %5 : vector<2x1xf32> to vector<2x200xf32>
    %7 = arith.cmpf oeq, %0, %6 : vector<2x200xf32>
    %cst_3 = arith.constant 2.000000e+02 : f32
    %8 = vector.broadcast %cst_3 : f32 to vector<2x200xf32>
    %9 = arith.select %7, %3, %8 : vector<2x200xi1>, vector<2x200xf32>
    %cst_4 = arith.constant dense<0x7F800000> : vector<2xf32>
    %10 = vector.multi_reduction <minimumf>, %9, %cst_4 [1] : vector<2x200xf32> to vector<2xf32>
    %11 = vector.shape_cast %10 : vector<2xf32> to vector<2x1xf32>
    %12 = vector.broadcast %11 : vector<2x1xf32> to vector<2x200xf32>
    %13 = arith.cmpf oeq, %3, %12 : vector<2x200xf32>
    %cst_5 = arith.constant 0x7F800000 : f32
    %14 = vector.broadcast %cst_5 : f32 to vector<2x200xf32>
    %15 = arith.select %13, %14, %0 : vector<2x200xi1>, vector<2x200xf32>
    %cst_6 = arith.constant dense<0x7F800000> : vector<2xf32>
    %16 = vector.multi_reduction <minimumf>, %15, %cst_6 [1] : vector<2x200xf32> to vector<2xf32>
    %17 = vector.shape_cast %16 : vector<2xf32> to vector<2x1xf32>
    %18 = vector.broadcast %17 : vector<2x1xf32> to vector<2x200xf32>
    %19 = arith.cmpf oeq, %15, %18 : vector<2x200xf32>
    %cst_7 = arith.constant 2.000000e+02 : f32
    %20 = vector.broadcast %cst_7 : f32 to vector<2x200xf32>
    %21 = arith.select %19, %3, %20 : vector<2x200xi1>, vector<2x200xf32>
    %cst_8 = arith.constant dense<0x7F800000> : vector<2xf32>
    %22 = vector.multi_reduction <minimumf>, %21, %cst_8 [1] : vector<2x200xf32> to vector<2xf32>
    %23 = vector.shape_cast %22 : vector<2xf32> to vector<2x1xf32>
    %24 = vector.broadcast %23 : vector<2x1xf32> to vector<2x200xf32>
    %25 = arith.cmpf oeq, %3, %24 : vector<2x200xf32>
    %26 = arith.ori %13, %25 : vector<2x200xi1>
    %cst_9 = arith.constant 0x7F800000 : f32
    %27 = vector.broadcast %cst_9 : f32 to vector<2x200xf32>
    %28 = arith.select %26, %27, %0 : vector<2x200xi1>, vector<2x200xf32>
    %cst_10 = arith.constant dense<0x7F800000> : vector<2xf32>
    %29 = vector.multi_reduction <minimumf>, %28, %cst_10 [1] : vector<2x200xf32> to vector<2xf32>
    %30 = vector.shape_cast %29 : vector<2xf32> to vector<2x1xf32>
    %31 = vector.broadcast %30 : vector<2x1xf32> to vector<2x200xf32>
    %32 = arith.cmpf oeq, %28, %31 : vector<2x200xf32>
    %cst_11 = arith.constant 2.000000e+02 : f32
    %33 = vector.broadcast %cst_11 : f32 to vector<2x200xf32>
    %34 = arith.select %32, %3, %33 : vector<2x200xi1>, vector<2x200xf32>
    %cst_12 = arith.constant dense<0x7F800000> : vector<2xf32>
    %35 = vector.multi_reduction <minimumf>, %34, %cst_12 [1] : vector<2x200xf32> to vector<2xf32>
    %36 = vector.shape_cast %35 : vector<2xf32> to vector<2x1xf32>
    %37 = vector.broadcast %36 : vector<2x1xf32> to vector<2x200xf32>
    %38 = arith.cmpf oeq, %3, %37 : vector<2x200xf32>
    %39 = arith.ori %26, %38 : vector<2x200xi1>
    %cst_13 = arith.constant 0x7F800000 : f32
    %40 = vector.broadcast %cst_13 : f32 to vector<2x200xf32>
    %41 = arith.select %39, %40, %0 : vector<2x200xi1>, vector<2x200xf32>
    %cst_14 = arith.constant dense<0x7F800000> : vector<2xf32>
    %42 = vector.multi_reduction <minimumf>, %41, %cst_14 [1] : vector<2x200xf32> to vector<2xf32>
    %43 = vector.shape_cast %42 : vector<2xf32> to vector<2x1xf32>
    %44 = vector.broadcast %43 : vector<2x1xf32> to vector<2x200xf32>
    %45 = arith.cmpf oeq, %41, %44 : vector<2x200xf32>
    %cst_15 = arith.constant 2.000000e+02 : f32
    %46 = vector.broadcast %cst_15 : f32 to vector<2x200xf32>
    %47 = arith.select %45, %3, %46 : vector<2x200xi1>, vector<2x200xf32>
    %cst_16 = arith.constant dense<0x7F800000> : vector<2xf32>
    %48 = vector.multi_reduction <minimumf>, %47, %cst_16 [1] : vector<2x200xf32> to vector<2xf32>
    %49 = vector.shape_cast %48 : vector<2xf32> to vector<2x1xf32>
    %50 = vector.broadcast %49 : vector<2x1xf32> to vector<2x200xf32>
    %51 = arith.cmpf oeq, %3, %50 : vector<2x200xf32>
    %52 = arith.ori %39, %51 : vector<2x200xi1>
    %cst_17 = arith.constant 0x7F800000 : f32
    %53 = vector.broadcast %cst_17 : f32 to vector<2x200xf32>
    %54 = arith.select %52, %53, %0 : vector<2x200xi1>, vector<2x200xf32>
    %cst_18 = arith.constant dense<0x7F800000> : vector<2xf32>
    %55 = vector.multi_reduction <minimumf>, %54, %cst_18 [1] : vector<2x200xf32> to vector<2xf32>
    %56 = vector.shape_cast %55 : vector<2xf32> to vector<2x1xf32>
    %57 = vector.broadcast %56 : vector<2x1xf32> to vector<2x200xf32>
    %58 = arith.cmpf oeq, %54, %57 : vector<2x200xf32>
    %cst_19 = arith.constant 2.000000e+02 : f32
    %59 = vector.broadcast %cst_19 : f32 to vector<2x200xf32>
    %60 = arith.select %58, %3, %59 : vector<2x200xi1>, vector<2x200xf32>
    %cst_20 = arith.constant dense<0x7F800000> : vector<2xf32>
    %61 = vector.multi_reduction <minimumf>, %60, %cst_20 [1] : vector<2x200xf32> to vector<2xf32>
    %62 = vector.shape_cast %61 : vector<2xf32> to vector<2x1xf32>
    %63 = vector.broadcast %62 : vector<2x1xf32> to vector<2x200xf32>
    %64 = arith.cmpf oeq, %3, %63 : vector<2x200xf32>
    %65 = arith.ori %52, %64 : vector<2x200xi1>
    %cst_21 = arith.constant 0x7F800000 : f32
    %66 = vector.broadcast %cst_21 : f32 to vector<2x200xf32>
    %67 = arith.select %65, %66, %0 : vector<2x200xi1>, vector<2x200xf32>
    %cst_22 = arith.constant dense<0x7F800000> : vector<2xf32>
    %68 = vector.multi_reduction <minimumf>, %67, %cst_22 [1] : vector<2x200xf32> to vector<2xf32>
    %69 = vector.shape_cast %68 : vector<2xf32> to vector<2x1xf32>
    %70 = vector.broadcast %69 : vector<2x1xf32> to vector<2x200xf32>
    %71 = arith.cmpf oeq, %67, %70 : vector<2x200xf32>
    %cst_23 = arith.constant 2.000000e+02 : f32
    %72 = vector.broadcast %cst_23 : f32 to vector<2x200xf32>
    %73 = arith.select %71, %3, %72 : vector<2x200xi1>, vector<2x200xf32>
    %cst_24 = arith.constant dense<0x7F800000> : vector<2xf32>
    %74 = vector.multi_reduction <minimumf>, %73, %cst_24 [1] : vector<2x200xf32> to vector<2xf32>
    %75 = vector.shape_cast %74 : vector<2xf32> to vector<2x1xf32>
    %76 = vector.broadcast %75 : vector<2x1xf32> to vector<2x200xf32>
    %77 = arith.cmpf oeq, %3, %76 : vector<2x200xf32>
    %78 = arith.ori %65, %77 : vector<2x200xi1>
    %cst_25 = arith.constant 0x7F800000 : f32
    %79 = vector.broadcast %cst_25 : f32 to vector<2x200xf32>
    %80 = arith.select %78, %79, %0 : vector<2x200xi1>, vector<2x200xf32>
    %cst_26 = arith.constant dense<0x7F800000> : vector<2xf32>
    %81 = vector.multi_reduction <minimumf>, %80, %cst_26 [1] : vector<2x200xf32> to vector<2xf32>
    %82 = vector.shape_cast %81 : vector<2xf32> to vector<2x1xf32>
    %83 = vector.broadcast %82 : vector<2x1xf32> to vector<2x200xf32>
    %84 = arith.cmpf oeq, %80, %83 : vector<2x200xf32>
    %cst_27 = arith.constant 2.000000e+02 : f32
    %85 = vector.broadcast %cst_27 : f32 to vector<2x200xf32>
    %86 = arith.select %84, %3, %85 : vector<2x200xi1>, vector<2x200xf32>
    %cst_28 = arith.constant dense<0x7F800000> : vector<2xf32>
    %87 = vector.multi_reduction <minimumf>, %86, %cst_28 [1] : vector<2x200xf32> to vector<2xf32>
    %88 = vector.shape_cast %87 : vector<2xf32> to vector<2x1xf32>
    %89 = vector.broadcast %88 : vector<2x1xf32> to vector<2x200xf32>
    %90 = arith.cmpf oeq, %3, %89 : vector<2x200xf32>
    %91 = arith.ori %78, %90 : vector<2x200xi1>
    %cst_29 = arith.constant 0x7F800000 : f32
    %92 = vector.broadcast %cst_29 : f32 to vector<2x200xf32>
    %93 = arith.select %91, %92, %0 : vector<2x200xi1>, vector<2x200xf32>
    %cst_30 = arith.constant dense<0x7F800000> : vector<2xf32>
    %94 = vector.multi_reduction <minimumf>, %93, %cst_30 [1] : vector<2x200xf32> to vector<2xf32>
    %95 = vector.shape_cast %94 : vector<2xf32> to vector<2x1xf32>
    %96 = vector.broadcast %95 : vector<2x1xf32> to vector<2x200xf32>
    %97 = arith.cmpf oeq, %93, %96 : vector<2x200xf32>
    %cst_31 = arith.constant 2.000000e+02 : f32
    %98 = vector.broadcast %cst_31 : f32 to vector<2x200xf32>
    %99 = arith.select %97, %3, %98 : vector<2x200xi1>, vector<2x200xf32>
    %cst_32 = arith.constant dense<0x7F800000> : vector<2xf32>
    %100 = vector.multi_reduction <minimumf>, %99, %cst_32 [1] : vector<2x200xf32> to vector<2xf32>
    %101 = vector.shape_cast %100 : vector<2xf32> to vector<2x1xf32>
    %102 = vector.broadcast %101 : vector<2x1xf32> to vector<2x200xf32>
    %103 = arith.cmpf oeq, %3, %102 : vector<2x200xf32>
    %104 = arith.ori %91, %103 : vector<2x200xi1>
    %cst_33 = arith.constant 0x7F800000 : f32
    %105 = vector.broadcast %cst_33 : f32 to vector<2x200xf32>
    %106 = arith.select %104, %105, %0 : vector<2x200xi1>, vector<2x200xf32>
    %cst_34 = arith.constant dense<0x7F800000> : vector<2xf32>
    %107 = vector.multi_reduction <minimumf>, %106, %cst_34 [1] : vector<2x200xf32> to vector<2xf32>
    %108 = vector.shape_cast %107 : vector<2xf32> to vector<2x1xf32>
    %109 = vector.broadcast %108 : vector<2x1xf32> to vector<2x200xf32>
    %110 = arith.cmpf oeq, %106, %109 : vector<2x200xf32>
    %cst_35 = arith.constant 2.000000e+02 : f32
    %111 = vector.broadcast %cst_35 : f32 to vector<2x200xf32>
    %112 = arith.select %110, %3, %111 : vector<2x200xi1>, vector<2x200xf32>
    %cst_36 = arith.constant dense<0x7F800000> : vector<2xf32>
    %113 = vector.multi_reduction <minimumf>, %112, %cst_36 [1] : vector<2x200xf32> to vector<2xf32>
    %114 = vector.shape_cast %113 : vector<2xf32> to vector<2x1xf32>
    %115 = vector.broadcast %114 : vector<2x1xf32> to vector<2x200xf32>
    %116 = arith.cmpf oeq, %3, %115 : vector<2x200xf32>
    %117 = arith.ori %104, %116 : vector<2x200xi1>
    %cst_37 = arith.constant 0x7F800000 : f32
    %118 = vector.broadcast %cst_37 : f32 to vector<2x200xf32>
    %119 = arith.select %117, %118, %0 : vector<2x200xi1>, vector<2x200xf32>
    %cst_38 = arith.constant dense<0x7F800000> : vector<2xf32>
    %120 = vector.multi_reduction <minimumf>, %119, %cst_38 [1] : vector<2x200xf32> to vector<2xf32>
    %121 = vector.shape_cast %120 : vector<2xf32> to vector<2x1xf32>
    %122 = vector.broadcast %121 : vector<2x1xf32> to vector<2x200xf32>
    %123 = arith.cmpf oeq, %119, %122 : vector<2x200xf32>
    %cst_39 = arith.constant 2.000000e+02 : f32
    %124 = vector.broadcast %cst_39 : f32 to vector<2x200xf32>
    %125 = arith.select %123, %3, %124 : vector<2x200xi1>, vector<2x200xf32>
    %cst_40 = arith.constant dense<0x7F800000> : vector<2xf32>
    %126 = vector.multi_reduction <minimumf>, %125, %cst_40 [1] : vector<2x200xf32> to vector<2xf32>
    %127 = vector.shape_cast %126 : vector<2xf32> to vector<2x1xf32>
    %128 = vector.broadcast %127 : vector<2x1xf32> to vector<2x200xf32>
    %129 = arith.cmpf oeq, %3, %128 : vector<2x200xf32>
    %130 = arith.ori %117, %129 : vector<2x200xi1>
    %cst_41 = arith.constant 0x7F800000 : f32
    %131 = vector.broadcast %cst_41 : f32 to vector<2x200xf32>
    %132 = arith.select %130, %131, %0 : vector<2x200xi1>, vector<2x200xf32>
    %cst_42 = arith.constant dense<0x7F800000> : vector<2xf32>
    %133 = vector.multi_reduction <minimumf>, %132, %cst_42 [1] : vector<2x200xf32> to vector<2xf32>
    %134 = vector.shape_cast %133 : vector<2xf32> to vector<2x1xf32>
    %135 = vector.broadcast %134 : vector<2x1xf32> to vector<2x200xf32>
    %136 = arith.cmpf oeq, %132, %135 : vector<2x200xf32>
    %cst_43 = arith.constant 2.000000e+02 : f32
    %137 = vector.broadcast %cst_43 : f32 to vector<2x200xf32>
    %138 = arith.select %136, %3, %137 : vector<2x200xi1>, vector<2x200xf32>
    %cst_44 = arith.constant dense<0x7F800000> : vector<2xf32>
    %139 = vector.multi_reduction <minimumf>, %138, %cst_44 [1] : vector<2x200xf32> to vector<2xf32>
    %140 = vector.shape_cast %139 : vector<2xf32> to vector<2x1xf32>
    %141 = vector.broadcast %140 : vector<2x1xf32> to vector<2x200xf32>
    %142 = arith.cmpf oeq, %3, %141 : vector<2x200xf32>
    %143 = arith.ori %130, %142 : vector<2x200xi1>
    %cst_45 = arith.constant 0x7F800000 : f32
    %144 = vector.broadcast %cst_45 : f32 to vector<2x200xf32>
    %145 = arith.select %143, %144, %0 : vector<2x200xi1>, vector<2x200xf32>
    %cst_46 = arith.constant dense<0x7F800000> : vector<2xf32>
    %146 = vector.multi_reduction <minimumf>, %145, %cst_46 [1] : vector<2x200xf32> to vector<2xf32>
    %147 = vector.shape_cast %146 : vector<2xf32> to vector<2x1xf32>
    %148 = vector.broadcast %147 : vector<2x1xf32> to vector<2x200xf32>
    %149 = arith.cmpf oeq, %145, %148 : vector<2x200xf32>
    %cst_47 = arith.constant 2.000000e+02 : f32
    %150 = vector.broadcast %cst_47 : f32 to vector<2x200xf32>
    %151 = arith.select %149, %3, %150 : vector<2x200xi1>, vector<2x200xf32>
    %cst_48 = arith.constant dense<0x7F800000> : vector<2xf32>
    %152 = vector.multi_reduction <minimumf>, %151, %cst_48 [1] : vector<2x200xf32> to vector<2xf32>
    %153 = vector.shape_cast %152 : vector<2xf32> to vector<2x1xf32>
    %154 = vector.broadcast %153 : vector<2x1xf32> to vector<2x200xf32>
    %155 = arith.cmpf oeq, %3, %154 : vector<2x200xf32>
    %156 = arith.ori %143, %155 : vector<2x200xi1>
    %cst_49 = arith.constant 0x7F800000 : f32
    %157 = vector.broadcast %cst_49 : f32 to vector<2x200xf32>
    %158 = arith.select %156, %157, %0 : vector<2x200xi1>, vector<2x200xf32>
    %cst_50 = arith.constant dense<0x7F800000> : vector<2xf32>
    %159 = vector.multi_reduction <minimumf>, %158, %cst_50 [1] : vector<2x200xf32> to vector<2xf32>
    %160 = vector.shape_cast %159 : vector<2xf32> to vector<2x1xf32>
    %161 = vector.broadcast %160 : vector<2x1xf32> to vector<2x200xf32>
    %162 = arith.cmpf oeq, %158, %161 : vector<2x200xf32>
    %cst_51 = arith.constant 2.000000e+02 : f32
    %163 = vector.broadcast %cst_51 : f32 to vector<2x200xf32>
    %164 = arith.select %162, %3, %163 : vector<2x200xi1>, vector<2x200xf32>
    %cst_52 = arith.constant dense<0x7F800000> : vector<2xf32>
    %165 = vector.multi_reduction <minimumf>, %164, %cst_52 [1] : vector<2x200xf32> to vector<2xf32>
    %166 = vector.shape_cast %165 : vector<2xf32> to vector<2x1xf32>
    %167 = vector.broadcast %166 : vector<2x1xf32> to vector<2x200xf32>
    %168 = arith.cmpf oeq, %3, %167 : vector<2x200xf32>
    %169 = arith.ori %156, %168 : vector<2x200xi1>
    %cst_53 = arith.constant 0x7F800000 : f32
    %170 = vector.broadcast %cst_53 : f32 to vector<2x200xf32>
    %171 = arith.select %169, %170, %0 : vector<2x200xi1>, vector<2x200xf32>
    %cst_54 = arith.constant dense<0x7F800000> : vector<2xf32>
    %172 = vector.multi_reduction <minimumf>, %171, %cst_54 [1] : vector<2x200xf32> to vector<2xf32>
    %173 = vector.shape_cast %172 : vector<2xf32> to vector<2x1xf32>
    %174 = vector.broadcast %173 : vector<2x1xf32> to vector<2x200xf32>
    %175 = arith.cmpf oeq, %171, %174 : vector<2x200xf32>
    %cst_55 = arith.constant 2.000000e+02 : f32
    %176 = vector.broadcast %cst_55 : f32 to vector<2x200xf32>
    %177 = arith.select %175, %3, %176 : vector<2x200xi1>, vector<2x200xf32>
    %cst_56 = arith.constant dense<0x7F800000> : vector<2xf32>
    %178 = vector.multi_reduction <minimumf>, %177, %cst_56 [1] : vector<2x200xf32> to vector<2xf32>
    %179 = vector.shape_cast %178 : vector<2xf32> to vector<2x1xf32>
    %180 = vector.broadcast %179 : vector<2x1xf32> to vector<2x200xf32>
    %181 = arith.cmpf oeq, %3, %180 : vector<2x200xf32>
    %182 = arith.ori %169, %181 : vector<2x200xi1>
    %cst_57 = arith.constant 0x7F800000 : f32
    %183 = vector.broadcast %cst_57 : f32 to vector<2x200xf32>
    %184 = arith.select %182, %183, %0 : vector<2x200xi1>, vector<2x200xf32>
    %cst_58 = arith.constant dense<0x7F800000> : vector<2xf32>
    %185 = vector.multi_reduction <minimumf>, %184, %cst_58 [1] : vector<2x200xf32> to vector<2xf32>
    %186 = vector.shape_cast %185 : vector<2xf32> to vector<2x1xf32>
    %187 = vector.broadcast %186 : vector<2x1xf32> to vector<2x200xf32>
    %188 = arith.cmpf oeq, %184, %187 : vector<2x200xf32>
    %cst_59 = arith.constant 2.000000e+02 : f32
    %189 = vector.broadcast %cst_59 : f32 to vector<2x200xf32>
    %190 = arith.select %188, %3, %189 : vector<2x200xi1>, vector<2x200xf32>
    %cst_60 = arith.constant dense<0x7F800000> : vector<2xf32>
    %191 = vector.multi_reduction <minimumf>, %190, %cst_60 [1] : vector<2x200xf32> to vector<2xf32>
    %192 = vector.shape_cast %191 : vector<2xf32> to vector<2x1xf32>
    %193 = vector.broadcast %192 : vector<2x1xf32> to vector<2x200xf32>
    %194 = arith.cmpf oeq, %3, %193 : vector<2x200xf32>
    %195 = arith.ori %182, %194 : vector<2x200xi1>
    %cst_61 = arith.constant 0x7F800000 : f32
    %196 = vector.broadcast %cst_61 : f32 to vector<2x200xf32>
    %197 = arith.select %195, %196, %0 : vector<2x200xi1>, vector<2x200xf32>
    %cst_62 = arith.constant dense<0x7F800000> : vector<2xf32>
    %198 = vector.multi_reduction <minimumf>, %197, %cst_62 [1] : vector<2x200xf32> to vector<2xf32>
    %199 = vector.shape_cast %198 : vector<2xf32> to vector<2x1xf32>
    %200 = vector.broadcast %199 : vector<2x1xf32> to vector<2x200xf32>
    %201 = arith.cmpf oeq, %197, %200 : vector<2x200xf32>
    %cst_63 = arith.constant 2.000000e+02 : f32
    %202 = vector.broadcast %cst_63 : f32 to vector<2x200xf32>
    %203 = arith.select %201, %3, %202 : vector<2x200xi1>, vector<2x200xf32>
    %cst_64 = arith.constant dense<0x7F800000> : vector<2xf32>
    %204 = vector.multi_reduction <minimumf>, %203, %cst_64 [1] : vector<2x200xf32> to vector<2xf32>
    %205 = vector.shape_cast %204 : vector<2xf32> to vector<2x1xf32>
    %206 = vector.broadcast %205 : vector<2x1xf32> to vector<2x200xf32>
    %207 = arith.cmpf oeq, %3, %206 : vector<2x200xf32>
    %208 = arith.ori %195, %207 : vector<2x200xi1>
    %cst_65 = arith.constant 0x7F800000 : f32
    %209 = vector.broadcast %cst_65 : f32 to vector<2x200xf32>
    %210 = arith.select %208, %209, %0 : vector<2x200xi1>, vector<2x200xf32>
    %cst_66 = arith.constant dense<0x7F800000> : vector<2xf32>
    %211 = vector.multi_reduction <minimumf>, %210, %cst_66 [1] : vector<2x200xf32> to vector<2xf32>
    %212 = vector.shape_cast %211 : vector<2xf32> to vector<2x1xf32>
    %213 = vector.broadcast %212 : vector<2x1xf32> to vector<2x200xf32>
    %214 = arith.cmpf oeq, %210, %213 : vector<2x200xf32>
    %cst_67 = arith.constant 2.000000e+02 : f32
    %215 = vector.broadcast %cst_67 : f32 to vector<2x200xf32>
    %216 = arith.select %214, %3, %215 : vector<2x200xi1>, vector<2x200xf32>
    %cst_68 = arith.constant dense<0x7F800000> : vector<2xf32>
    %217 = vector.multi_reduction <minimumf>, %216, %cst_68 [1] : vector<2x200xf32> to vector<2xf32>
    %218 = vector.shape_cast %217 : vector<2xf32> to vector<2x1xf32>
    %219 = vector.broadcast %218 : vector<2x1xf32> to vector<2x200xf32>
    %220 = arith.cmpf oeq, %3, %219 : vector<2x200xf32>
    %221 = arith.ori %208, %220 : vector<2x200xi1>
    %cst_69 = arith.constant 0x7F800000 : f32
    %222 = vector.broadcast %cst_69 : f32 to vector<2x200xf32>
    %223 = arith.select %221, %222, %0 : vector<2x200xi1>, vector<2x200xf32>
    %cst_70 = arith.constant dense<0x7F800000> : vector<2xf32>
    %224 = vector.multi_reduction <minimumf>, %223, %cst_70 [1] : vector<2x200xf32> to vector<2xf32>
    %225 = vector.shape_cast %224 : vector<2xf32> to vector<2x1xf32>
    %226 = vector.broadcast %225 : vector<2x1xf32> to vector<2x200xf32>
    %227 = arith.cmpf oeq, %223, %226 : vector<2x200xf32>
    %cst_71 = arith.constant 2.000000e+02 : f32
    %228 = vector.broadcast %cst_71 : f32 to vector<2x200xf32>
    %229 = arith.select %227, %3, %228 : vector<2x200xi1>, vector<2x200xf32>
    %cst_72 = arith.constant dense<0x7F800000> : vector<2xf32>
    %230 = vector.multi_reduction <minimumf>, %229, %cst_72 [1] : vector<2x200xf32> to vector<2xf32>
    %231 = vector.shape_cast %230 : vector<2xf32> to vector<2x1xf32>
    %232 = vector.broadcast %231 : vector<2x1xf32> to vector<2x200xf32>
    %233 = arith.cmpf oeq, %3, %232 : vector<2x200xf32>
    %234 = arith.ori %221, %233 : vector<2x200xi1>
    %cst_73 = arith.constant 0x7F800000 : f32
    %235 = vector.broadcast %cst_73 : f32 to vector<2x200xf32>
    %236 = arith.select %234, %235, %0 : vector<2x200xi1>, vector<2x200xf32>
    %cst_74 = arith.constant dense<0x7F800000> : vector<2xf32>
    %237 = vector.multi_reduction <minimumf>, %236, %cst_74 [1] : vector<2x200xf32> to vector<2xf32>
    %238 = vector.shape_cast %237 : vector<2xf32> to vector<2x1xf32>
    %239 = vector.broadcast %238 : vector<2x1xf32> to vector<2x200xf32>
    %240 = arith.cmpf oeq, %236, %239 : vector<2x200xf32>
    %cst_75 = arith.constant 2.000000e+02 : f32
    %241 = vector.broadcast %cst_75 : f32 to vector<2x200xf32>
    %242 = arith.select %240, %3, %241 : vector<2x200xi1>, vector<2x200xf32>
    %cst_76 = arith.constant dense<0x7F800000> : vector<2xf32>
    %243 = vector.multi_reduction <minimumf>, %242, %cst_76 [1] : vector<2x200xf32> to vector<2xf32>
    %244 = vector.shape_cast %243 : vector<2xf32> to vector<2x1xf32>
    %245 = vector.broadcast %244 : vector<2x1xf32> to vector<2x200xf32>
    %246 = arith.cmpf oeq, %3, %245 : vector<2x200xf32>
    %247 = arith.ori %234, %246 : vector<2x200xi1>
    %cst_77 = arith.constant 0x7F800000 : f32
    %248 = vector.broadcast %cst_77 : f32 to vector<2x200xf32>
    %249 = arith.select %247, %248, %0 : vector<2x200xi1>, vector<2x200xf32>
    %cst_78 = arith.constant dense<0x7F800000> : vector<2xf32>
    %250 = vector.multi_reduction <minimumf>, %249, %cst_78 [1] : vector<2x200xf32> to vector<2xf32>
    %251 = vector.shape_cast %250 : vector<2xf32> to vector<2x1xf32>
    %252 = vector.broadcast %251 : vector<2x1xf32> to vector<2x200xf32>
    %253 = arith.cmpf oeq, %249, %252 : vector<2x200xf32>
    %cst_79 = arith.constant 2.000000e+02 : f32
    %254 = vector.broadcast %cst_79 : f32 to vector<2x200xf32>
    %255 = arith.select %253, %3, %254 : vector<2x200xi1>, vector<2x200xf32>
    %cst_80 = arith.constant dense<0x7F800000> : vector<2xf32>
    %256 = vector.multi_reduction <minimumf>, %255, %cst_80 [1] : vector<2x200xf32> to vector<2xf32>
    %257 = vector.shape_cast %256 : vector<2xf32> to vector<2x1xf32>
    %258 = vector.broadcast %257 : vector<2x1xf32> to vector<2x200xf32>
    %259 = arith.cmpf oeq, %3, %258 : vector<2x200xf32>
    %260 = arith.ori %247, %259 : vector<2x200xi1>
    %cst_81 = arith.constant dense<0x7F800000> : vector<2xf32>
    %261 = vector.multi_reduction <minimumf>, %1, %cst_81 [1] : vector<2x200xf32> to vector<2xf32>
    %262 = vector.shape_cast %261 : vector<2xf32> to vector<2x1xf32>
    %263 = vector.broadcast %262 : vector<2x1xf32> to vector<2x200xf32>
    %264 = arith.cmpf oeq, %1, %263 : vector<2x200xf32>
    %cst_82 = arith.constant 2.000000e+02 : f32
    %265 = vector.broadcast %cst_82 : f32 to vector<2x200xf32>
    %266 = arith.select %264, %3, %265 : vector<2x200xi1>, vector<2x200xf32>
    %cst_83 = arith.constant dense<0x7F800000> : vector<2xf32>
    %267 = vector.multi_reduction <minimumf>, %266, %cst_83 [1] : vector<2x200xf32> to vector<2xf32>
    %268 = vector.shape_cast %267 : vector<2xf32> to vector<2x1xf32>
    %269 = vector.broadcast %268 : vector<2x1xf32> to vector<2x200xf32>
    %270 = arith.cmpf oeq, %3, %269 : vector<2x200xf32>
    %cst_84 = arith.constant 0x7F800000 : f32
    %271 = vector.broadcast %cst_84 : f32 to vector<2x200xf32>
    %272 = arith.select %270, %271, %1 : vector<2x200xi1>, vector<2x200xf32>
    %cst_85 = arith.constant dense<0x7F800000> : vector<2xf32>
    %273 = vector.multi_reduction <minimumf>, %272, %cst_85 [1] : vector<2x200xf32> to vector<2xf32>
    %274 = vector.shape_cast %273 : vector<2xf32> to vector<2x1xf32>
    %275 = vector.broadcast %274 : vector<2x1xf32> to vector<2x200xf32>
    %276 = arith.cmpf oeq, %272, %275 : vector<2x200xf32>
    %cst_86 = arith.constant 2.000000e+02 : f32
    %277 = vector.broadcast %cst_86 : f32 to vector<2x200xf32>
    %278 = arith.select %276, %3, %277 : vector<2x200xi1>, vector<2x200xf32>
    %cst_87 = arith.constant dense<0x7F800000> : vector<2xf32>
    %279 = vector.multi_reduction <minimumf>, %278, %cst_87 [1] : vector<2x200xf32> to vector<2xf32>
    %280 = vector.shape_cast %279 : vector<2xf32> to vector<2x1xf32>
    %281 = vector.broadcast %280 : vector<2x1xf32> to vector<2x200xf32>
    %282 = arith.cmpf oeq, %3, %281 : vector<2x200xf32>
    %283 = arith.ori %270, %282 : vector<2x200xi1>
    %cst_88 = arith.constant 0x7F800000 : f32
    %284 = vector.broadcast %cst_88 : f32 to vector<2x200xf32>
    %285 = arith.select %283, %284, %1 : vector<2x200xi1>, vector<2x200xf32>
    %cst_89 = arith.constant dense<0x7F800000> : vector<2xf32>
    %286 = vector.multi_reduction <minimumf>, %285, %cst_89 [1] : vector<2x200xf32> to vector<2xf32>
    %287 = vector.shape_cast %286 : vector<2xf32> to vector<2x1xf32>
    %288 = vector.broadcast %287 : vector<2x1xf32> to vector<2x200xf32>
    %289 = arith.cmpf oeq, %285, %288 : vector<2x200xf32>
    %cst_90 = arith.constant 2.000000e+02 : f32
    %290 = vector.broadcast %cst_90 : f32 to vector<2x200xf32>
    %291 = arith.select %289, %3, %290 : vector<2x200xi1>, vector<2x200xf32>
    %cst_91 = arith.constant dense<0x7F800000> : vector<2xf32>
    %292 = vector.multi_reduction <minimumf>, %291, %cst_91 [1] : vector<2x200xf32> to vector<2xf32>
    %293 = vector.shape_cast %292 : vector<2xf32> to vector<2x1xf32>
    %294 = vector.broadcast %293 : vector<2x1xf32> to vector<2x200xf32>
    %295 = arith.cmpf oeq, %3, %294 : vector<2x200xf32>
    %296 = arith.ori %283, %295 : vector<2x200xi1>
    %cst_92 = arith.constant 0x7F800000 : f32
    %297 = vector.broadcast %cst_92 : f32 to vector<2x200xf32>
    %298 = arith.select %296, %297, %1 : vector<2x200xi1>, vector<2x200xf32>
    %cst_93 = arith.constant dense<0x7F800000> : vector<2xf32>
    %299 = vector.multi_reduction <minimumf>, %298, %cst_93 [1] : vector<2x200xf32> to vector<2xf32>
    %300 = vector.shape_cast %299 : vector<2xf32> to vector<2x1xf32>
    %301 = vector.broadcast %300 : vector<2x1xf32> to vector<2x200xf32>
    %302 = arith.cmpf oeq, %298, %301 : vector<2x200xf32>
    %cst_94 = arith.constant 2.000000e+02 : f32
    %303 = vector.broadcast %cst_94 : f32 to vector<2x200xf32>
    %304 = arith.select %302, %3, %303 : vector<2x200xi1>, vector<2x200xf32>
    %cst_95 = arith.constant dense<0x7F800000> : vector<2xf32>
    %305 = vector.multi_reduction <minimumf>, %304, %cst_95 [1] : vector<2x200xf32> to vector<2xf32>
    %306 = vector.shape_cast %305 : vector<2xf32> to vector<2x1xf32>
    %307 = vector.broadcast %306 : vector<2x1xf32> to vector<2x200xf32>
    %308 = arith.cmpf oeq, %3, %307 : vector<2x200xf32>
    %309 = arith.ori %296, %308 : vector<2x200xi1>
    %cst_96 = arith.constant 0x7F800000 : f32
    %310 = vector.broadcast %cst_96 : f32 to vector<2x200xf32>
    %311 = arith.select %309, %310, %1 : vector<2x200xi1>, vector<2x200xf32>
    %cst_97 = arith.constant dense<0x7F800000> : vector<2xf32>
    %312 = vector.multi_reduction <minimumf>, %311, %cst_97 [1] : vector<2x200xf32> to vector<2xf32>
    %313 = vector.shape_cast %312 : vector<2xf32> to vector<2x1xf32>
    %314 = vector.broadcast %313 : vector<2x1xf32> to vector<2x200xf32>
    %315 = arith.cmpf oeq, %311, %314 : vector<2x200xf32>
    %cst_98 = arith.constant 2.000000e+02 : f32
    %316 = vector.broadcast %cst_98 : f32 to vector<2x200xf32>
    %317 = arith.select %315, %3, %316 : vector<2x200xi1>, vector<2x200xf32>
    %cst_99 = arith.constant dense<0x7F800000> : vector<2xf32>
    %318 = vector.multi_reduction <minimumf>, %317, %cst_99 [1] : vector<2x200xf32> to vector<2xf32>
    %319 = vector.shape_cast %318 : vector<2xf32> to vector<2x1xf32>
    %320 = vector.broadcast %319 : vector<2x1xf32> to vector<2x200xf32>
    %321 = arith.cmpf oeq, %3, %320 : vector<2x200xf32>
    %322 = arith.ori %309, %321 : vector<2x200xi1>
    %cst_100 = arith.constant 0x7F800000 : f32
    %323 = vector.broadcast %cst_100 : f32 to vector<2x200xf32>
    %324 = arith.select %322, %323, %1 : vector<2x200xi1>, vector<2x200xf32>
    %cst_101 = arith.constant dense<0x7F800000> : vector<2xf32>
    %325 = vector.multi_reduction <minimumf>, %324, %cst_101 [1] : vector<2x200xf32> to vector<2xf32>
    %326 = vector.shape_cast %325 : vector<2xf32> to vector<2x1xf32>
    %327 = vector.broadcast %326 : vector<2x1xf32> to vector<2x200xf32>
    %328 = arith.cmpf oeq, %324, %327 : vector<2x200xf32>
    %cst_102 = arith.constant 2.000000e+02 : f32
    %329 = vector.broadcast %cst_102 : f32 to vector<2x200xf32>
    %330 = arith.select %328, %3, %329 : vector<2x200xi1>, vector<2x200xf32>
    %cst_103 = arith.constant dense<0x7F800000> : vector<2xf32>
    %331 = vector.multi_reduction <minimumf>, %330, %cst_103 [1] : vector<2x200xf32> to vector<2xf32>
    %332 = vector.shape_cast %331 : vector<2xf32> to vector<2x1xf32>
    %333 = vector.broadcast %332 : vector<2x1xf32> to vector<2x200xf32>
    %334 = arith.cmpf oeq, %3, %333 : vector<2x200xf32>
    %335 = arith.ori %322, %334 : vector<2x200xi1>
    %cst_104 = arith.constant 0x7F800000 : f32
    %336 = vector.broadcast %cst_104 : f32 to vector<2x200xf32>
    %337 = arith.select %335, %336, %1 : vector<2x200xi1>, vector<2x200xf32>
    %cst_105 = arith.constant dense<0x7F800000> : vector<2xf32>
    %338 = vector.multi_reduction <minimumf>, %337, %cst_105 [1] : vector<2x200xf32> to vector<2xf32>
    %339 = vector.shape_cast %338 : vector<2xf32> to vector<2x1xf32>
    %340 = vector.broadcast %339 : vector<2x1xf32> to vector<2x200xf32>
    %341 = arith.cmpf oeq, %337, %340 : vector<2x200xf32>
    %cst_106 = arith.constant 2.000000e+02 : f32
    %342 = vector.broadcast %cst_106 : f32 to vector<2x200xf32>
    %343 = arith.select %341, %3, %342 : vector<2x200xi1>, vector<2x200xf32>
    %cst_107 = arith.constant dense<0x7F800000> : vector<2xf32>
    %344 = vector.multi_reduction <minimumf>, %343, %cst_107 [1] : vector<2x200xf32> to vector<2xf32>
    %345 = vector.shape_cast %344 : vector<2xf32> to vector<2x1xf32>
    %346 = vector.broadcast %345 : vector<2x1xf32> to vector<2x200xf32>
    %347 = arith.cmpf oeq, %3, %346 : vector<2x200xf32>
    %348 = arith.ori %335, %347 : vector<2x200xi1>
    %cst_108 = arith.constant 0x7F800000 : f32
    %349 = vector.broadcast %cst_108 : f32 to vector<2x200xf32>
    %350 = arith.select %348, %349, %1 : vector<2x200xi1>, vector<2x200xf32>
    %cst_109 = arith.constant dense<0x7F800000> : vector<2xf32>
    %351 = vector.multi_reduction <minimumf>, %350, %cst_109 [1] : vector<2x200xf32> to vector<2xf32>
    %352 = vector.shape_cast %351 : vector<2xf32> to vector<2x1xf32>
    %353 = vector.broadcast %352 : vector<2x1xf32> to vector<2x200xf32>
    %354 = arith.cmpf oeq, %350, %353 : vector<2x200xf32>
    %cst_110 = arith.constant 2.000000e+02 : f32
    %355 = vector.broadcast %cst_110 : f32 to vector<2x200xf32>
    %356 = arith.select %354, %3, %355 : vector<2x200xi1>, vector<2x200xf32>
    %cst_111 = arith.constant dense<0x7F800000> : vector<2xf32>
    %357 = vector.multi_reduction <minimumf>, %356, %cst_111 [1] : vector<2x200xf32> to vector<2xf32>
    %358 = vector.shape_cast %357 : vector<2xf32> to vector<2x1xf32>
    %359 = vector.broadcast %358 : vector<2x1xf32> to vector<2x200xf32>
    %360 = arith.cmpf oeq, %3, %359 : vector<2x200xf32>
    %361 = arith.ori %348, %360 : vector<2x200xi1>
    %cst_112 = arith.constant 0x7F800000 : f32
    %362 = vector.broadcast %cst_112 : f32 to vector<2x200xf32>
    %363 = arith.select %361, %362, %1 : vector<2x200xi1>, vector<2x200xf32>
    %cst_113 = arith.constant dense<0x7F800000> : vector<2xf32>
    %364 = vector.multi_reduction <minimumf>, %363, %cst_113 [1] : vector<2x200xf32> to vector<2xf32>
    %365 = vector.shape_cast %364 : vector<2xf32> to vector<2x1xf32>
    %366 = vector.broadcast %365 : vector<2x1xf32> to vector<2x200xf32>
    %367 = arith.cmpf oeq, %363, %366 : vector<2x200xf32>
    %cst_114 = arith.constant 2.000000e+02 : f32
    %368 = vector.broadcast %cst_114 : f32 to vector<2x200xf32>
    %369 = arith.select %367, %3, %368 : vector<2x200xi1>, vector<2x200xf32>
    %cst_115 = arith.constant dense<0x7F800000> : vector<2xf32>
    %370 = vector.multi_reduction <minimumf>, %369, %cst_115 [1] : vector<2x200xf32> to vector<2xf32>
    %371 = vector.shape_cast %370 : vector<2xf32> to vector<2x1xf32>
    %372 = vector.broadcast %371 : vector<2x1xf32> to vector<2x200xf32>
    %373 = arith.cmpf oeq, %3, %372 : vector<2x200xf32>
    %374 = arith.ori %361, %373 : vector<2x200xi1>
    %cst_116 = arith.constant 0x7F800000 : f32
    %375 = vector.broadcast %cst_116 : f32 to vector<2x200xf32>
    %376 = arith.select %374, %375, %1 : vector<2x200xi1>, vector<2x200xf32>
    %cst_117 = arith.constant dense<0x7F800000> : vector<2xf32>
    %377 = vector.multi_reduction <minimumf>, %376, %cst_117 [1] : vector<2x200xf32> to vector<2xf32>
    %378 = vector.shape_cast %377 : vector<2xf32> to vector<2x1xf32>
    %379 = vector.broadcast %378 : vector<2x1xf32> to vector<2x200xf32>
    %380 = arith.cmpf oeq, %376, %379 : vector<2x200xf32>
    %cst_118 = arith.constant 2.000000e+02 : f32
    %381 = vector.broadcast %cst_118 : f32 to vector<2x200xf32>
    %382 = arith.select %380, %3, %381 : vector<2x200xi1>, vector<2x200xf32>
    %cst_119 = arith.constant dense<0x7F800000> : vector<2xf32>
    %383 = vector.multi_reduction <minimumf>, %382, %cst_119 [1] : vector<2x200xf32> to vector<2xf32>
    %384 = vector.shape_cast %383 : vector<2xf32> to vector<2x1xf32>
    %385 = vector.broadcast %384 : vector<2x1xf32> to vector<2x200xf32>
    %386 = arith.cmpf oeq, %3, %385 : vector<2x200xf32>
    %387 = arith.ori %374, %386 : vector<2x200xi1>
    %cst_120 = arith.constant 0x7F800000 : f32
    %388 = vector.broadcast %cst_120 : f32 to vector<2x200xf32>
    %389 = arith.select %387, %388, %1 : vector<2x200xi1>, vector<2x200xf32>
    %cst_121 = arith.constant dense<0x7F800000> : vector<2xf32>
    %390 = vector.multi_reduction <minimumf>, %389, %cst_121 [1] : vector<2x200xf32> to vector<2xf32>
    %391 = vector.shape_cast %390 : vector<2xf32> to vector<2x1xf32>
    %392 = vector.broadcast %391 : vector<2x1xf32> to vector<2x200xf32>
    %393 = arith.cmpf oeq, %389, %392 : vector<2x200xf32>
    %cst_122 = arith.constant 2.000000e+02 : f32
    %394 = vector.broadcast %cst_122 : f32 to vector<2x200xf32>
    %395 = arith.select %393, %3, %394 : vector<2x200xi1>, vector<2x200xf32>
    %cst_123 = arith.constant dense<0x7F800000> : vector<2xf32>
    %396 = vector.multi_reduction <minimumf>, %395, %cst_123 [1] : vector<2x200xf32> to vector<2xf32>
    %397 = vector.shape_cast %396 : vector<2xf32> to vector<2x1xf32>
    %398 = vector.broadcast %397 : vector<2x1xf32> to vector<2x200xf32>
    %399 = arith.cmpf oeq, %3, %398 : vector<2x200xf32>
    %400 = arith.ori %387, %399 : vector<2x200xi1>
    %cst_124 = arith.constant 0x7F800000 : f32
    %401 = vector.broadcast %cst_124 : f32 to vector<2x200xf32>
    %402 = arith.select %400, %401, %1 : vector<2x200xi1>, vector<2x200xf32>
    %cst_125 = arith.constant dense<0x7F800000> : vector<2xf32>
    %403 = vector.multi_reduction <minimumf>, %402, %cst_125 [1] : vector<2x200xf32> to vector<2xf32>
    %404 = vector.shape_cast %403 : vector<2xf32> to vector<2x1xf32>
    %405 = vector.broadcast %404 : vector<2x1xf32> to vector<2x200xf32>
    %406 = arith.cmpf oeq, %402, %405 : vector<2x200xf32>
    %cst_126 = arith.constant 2.000000e+02 : f32
    %407 = vector.broadcast %cst_126 : f32 to vector<2x200xf32>
    %408 = arith.select %406, %3, %407 : vector<2x200xi1>, vector<2x200xf32>
    %cst_127 = arith.constant dense<0x7F800000> : vector<2xf32>
    %409 = vector.multi_reduction <minimumf>, %408, %cst_127 [1] : vector<2x200xf32> to vector<2xf32>
    %410 = vector.shape_cast %409 : vector<2xf32> to vector<2x1xf32>
    %411 = vector.broadcast %410 : vector<2x1xf32> to vector<2x200xf32>
    %412 = arith.cmpf oeq, %3, %411 : vector<2x200xf32>
    %413 = arith.ori %400, %412 : vector<2x200xi1>
    %cst_128 = arith.constant 0x7F800000 : f32
    %414 = vector.broadcast %cst_128 : f32 to vector<2x200xf32>
    %415 = arith.select %413, %414, %1 : vector<2x200xi1>, vector<2x200xf32>
    %cst_129 = arith.constant dense<0x7F800000> : vector<2xf32>
    %416 = vector.multi_reduction <minimumf>, %415, %cst_129 [1] : vector<2x200xf32> to vector<2xf32>
    %417 = vector.shape_cast %416 : vector<2xf32> to vector<2x1xf32>
    %418 = vector.broadcast %417 : vector<2x1xf32> to vector<2x200xf32>
    %419 = arith.cmpf oeq, %415, %418 : vector<2x200xf32>
    %cst_130 = arith.constant 2.000000e+02 : f32
    %420 = vector.broadcast %cst_130 : f32 to vector<2x200xf32>
    %421 = arith.select %419, %3, %420 : vector<2x200xi1>, vector<2x200xf32>
    %cst_131 = arith.constant dense<0x7F800000> : vector<2xf32>
    %422 = vector.multi_reduction <minimumf>, %421, %cst_131 [1] : vector<2x200xf32> to vector<2xf32>
    %423 = vector.shape_cast %422 : vector<2xf32> to vector<2x1xf32>
    %424 = vector.broadcast %423 : vector<2x1xf32> to vector<2x200xf32>
    %425 = arith.cmpf oeq, %3, %424 : vector<2x200xf32>
    %426 = arith.ori %413, %425 : vector<2x200xi1>
    %cst_132 = arith.constant 0x7F800000 : f32
    %427 = vector.broadcast %cst_132 : f32 to vector<2x200xf32>
    %428 = arith.select %426, %427, %1 : vector<2x200xi1>, vector<2x200xf32>
    %cst_133 = arith.constant dense<0x7F800000> : vector<2xf32>
    %429 = vector.multi_reduction <minimumf>, %428, %cst_133 [1] : vector<2x200xf32> to vector<2xf32>
    %430 = vector.shape_cast %429 : vector<2xf32> to vector<2x1xf32>
    %431 = vector.broadcast %430 : vector<2x1xf32> to vector<2x200xf32>
    %432 = arith.cmpf oeq, %428, %431 : vector<2x200xf32>
    %cst_134 = arith.constant 2.000000e+02 : f32
    %433 = vector.broadcast %cst_134 : f32 to vector<2x200xf32>
    %434 = arith.select %432, %3, %433 : vector<2x200xi1>, vector<2x200xf32>
    %cst_135 = arith.constant dense<0x7F800000> : vector<2xf32>
    %435 = vector.multi_reduction <minimumf>, %434, %cst_135 [1] : vector<2x200xf32> to vector<2xf32>
    %436 = vector.shape_cast %435 : vector<2xf32> to vector<2x1xf32>
    %437 = vector.broadcast %436 : vector<2x1xf32> to vector<2x200xf32>
    %438 = arith.cmpf oeq, %3, %437 : vector<2x200xf32>
    %439 = arith.ori %426, %438 : vector<2x200xi1>
    %cst_136 = arith.constant 0x7F800000 : f32
    %440 = vector.broadcast %cst_136 : f32 to vector<2x200xf32>
    %441 = arith.select %439, %440, %1 : vector<2x200xi1>, vector<2x200xf32>
    %cst_137 = arith.constant dense<0x7F800000> : vector<2xf32>
    %442 = vector.multi_reduction <minimumf>, %441, %cst_137 [1] : vector<2x200xf32> to vector<2xf32>
    %443 = vector.shape_cast %442 : vector<2xf32> to vector<2x1xf32>
    %444 = vector.broadcast %443 : vector<2x1xf32> to vector<2x200xf32>
    %445 = arith.cmpf oeq, %441, %444 : vector<2x200xf32>
    %cst_138 = arith.constant 2.000000e+02 : f32
    %446 = vector.broadcast %cst_138 : f32 to vector<2x200xf32>
    %447 = arith.select %445, %3, %446 : vector<2x200xi1>, vector<2x200xf32>
    %cst_139 = arith.constant dense<0x7F800000> : vector<2xf32>
    %448 = vector.multi_reduction <minimumf>, %447, %cst_139 [1] : vector<2x200xf32> to vector<2xf32>
    %449 = vector.shape_cast %448 : vector<2xf32> to vector<2x1xf32>
    %450 = vector.broadcast %449 : vector<2x1xf32> to vector<2x200xf32>
    %451 = arith.cmpf oeq, %3, %450 : vector<2x200xf32>
    %452 = arith.ori %439, %451 : vector<2x200xi1>
    %cst_140 = arith.constant 0x7F800000 : f32
    %453 = vector.broadcast %cst_140 : f32 to vector<2x200xf32>
    %454 = arith.select %452, %453, %1 : vector<2x200xi1>, vector<2x200xf32>
    %cst_141 = arith.constant dense<0x7F800000> : vector<2xf32>
    %455 = vector.multi_reduction <minimumf>, %454, %cst_141 [1] : vector<2x200xf32> to vector<2xf32>
    %456 = vector.shape_cast %455 : vector<2xf32> to vector<2x1xf32>
    %457 = vector.broadcast %456 : vector<2x1xf32> to vector<2x200xf32>
    %458 = arith.cmpf oeq, %454, %457 : vector<2x200xf32>
    %cst_142 = arith.constant 2.000000e+02 : f32
    %459 = vector.broadcast %cst_142 : f32 to vector<2x200xf32>
    %460 = arith.select %458, %3, %459 : vector<2x200xi1>, vector<2x200xf32>
    %cst_143 = arith.constant dense<0x7F800000> : vector<2xf32>
    %461 = vector.multi_reduction <minimumf>, %460, %cst_143 [1] : vector<2x200xf32> to vector<2xf32>
    %462 = vector.shape_cast %461 : vector<2xf32> to vector<2x1xf32>
    %463 = vector.broadcast %462 : vector<2x1xf32> to vector<2x200xf32>
    %464 = arith.cmpf oeq, %3, %463 : vector<2x200xf32>
    %465 = arith.ori %452, %464 : vector<2x200xi1>
    %cst_144 = arith.constant 0x7F800000 : f32
    %466 = vector.broadcast %cst_144 : f32 to vector<2x200xf32>
    %467 = arith.select %465, %466, %1 : vector<2x200xi1>, vector<2x200xf32>
    %cst_145 = arith.constant dense<0x7F800000> : vector<2xf32>
    %468 = vector.multi_reduction <minimumf>, %467, %cst_145 [1] : vector<2x200xf32> to vector<2xf32>
    %469 = vector.shape_cast %468 : vector<2xf32> to vector<2x1xf32>
    %470 = vector.broadcast %469 : vector<2x1xf32> to vector<2x200xf32>
    %471 = arith.cmpf oeq, %467, %470 : vector<2x200xf32>
    %cst_146 = arith.constant 2.000000e+02 : f32
    %472 = vector.broadcast %cst_146 : f32 to vector<2x200xf32>
    %473 = arith.select %471, %3, %472 : vector<2x200xi1>, vector<2x200xf32>
    %cst_147 = arith.constant dense<0x7F800000> : vector<2xf32>
    %474 = vector.multi_reduction <minimumf>, %473, %cst_147 [1] : vector<2x200xf32> to vector<2xf32>
    %475 = vector.shape_cast %474 : vector<2xf32> to vector<2x1xf32>
    %476 = vector.broadcast %475 : vector<2x1xf32> to vector<2x200xf32>
    %477 = arith.cmpf oeq, %3, %476 : vector<2x200xf32>
    %478 = arith.ori %465, %477 : vector<2x200xi1>
    %cst_148 = arith.constant 0x7F800000 : f32
    %479 = vector.broadcast %cst_148 : f32 to vector<2x200xf32>
    %480 = arith.select %478, %479, %1 : vector<2x200xi1>, vector<2x200xf32>
    %cst_149 = arith.constant dense<0x7F800000> : vector<2xf32>
    %481 = vector.multi_reduction <minimumf>, %480, %cst_149 [1] : vector<2x200xf32> to vector<2xf32>
    %482 = vector.shape_cast %481 : vector<2xf32> to vector<2x1xf32>
    %483 = vector.broadcast %482 : vector<2x1xf32> to vector<2x200xf32>
    %484 = arith.cmpf oeq, %480, %483 : vector<2x200xf32>
    %cst_150 = arith.constant 2.000000e+02 : f32
    %485 = vector.broadcast %cst_150 : f32 to vector<2x200xf32>
    %486 = arith.select %484, %3, %485 : vector<2x200xi1>, vector<2x200xf32>
    %cst_151 = arith.constant dense<0x7F800000> : vector<2xf32>
    %487 = vector.multi_reduction <minimumf>, %486, %cst_151 [1] : vector<2x200xf32> to vector<2xf32>
    %488 = vector.shape_cast %487 : vector<2xf32> to vector<2x1xf32>
    %489 = vector.broadcast %488 : vector<2x1xf32> to vector<2x200xf32>
    %490 = arith.cmpf oeq, %3, %489 : vector<2x200xf32>
    %491 = arith.ori %478, %490 : vector<2x200xi1>
    %cst_152 = arith.constant 0x7F800000 : f32
    %492 = vector.broadcast %cst_152 : f32 to vector<2x200xf32>
    %493 = arith.select %491, %492, %1 : vector<2x200xi1>, vector<2x200xf32>
    %cst_153 = arith.constant dense<0x7F800000> : vector<2xf32>
    %494 = vector.multi_reduction <minimumf>, %493, %cst_153 [1] : vector<2x200xf32> to vector<2xf32>
    %495 = vector.shape_cast %494 : vector<2xf32> to vector<2x1xf32>
    %496 = vector.broadcast %495 : vector<2x1xf32> to vector<2x200xf32>
    %497 = arith.cmpf oeq, %493, %496 : vector<2x200xf32>
    %cst_154 = arith.constant 2.000000e+02 : f32
    %498 = vector.broadcast %cst_154 : f32 to vector<2x200xf32>
    %499 = arith.select %497, %3, %498 : vector<2x200xi1>, vector<2x200xf32>
    %cst_155 = arith.constant dense<0x7F800000> : vector<2xf32>
    %500 = vector.multi_reduction <minimumf>, %499, %cst_155 [1] : vector<2x200xf32> to vector<2xf32>
    %501 = vector.shape_cast %500 : vector<2xf32> to vector<2x1xf32>
    %502 = vector.broadcast %501 : vector<2x1xf32> to vector<2x200xf32>
    %503 = arith.cmpf oeq, %3, %502 : vector<2x200xf32>
    %504 = arith.ori %491, %503 : vector<2x200xi1>
    %cst_156 = arith.constant 0x7F800000 : f32
    %505 = vector.broadcast %cst_156 : f32 to vector<2x200xf32>
    %506 = arith.select %504, %505, %1 : vector<2x200xi1>, vector<2x200xf32>
    %cst_157 = arith.constant dense<0x7F800000> : vector<2xf32>
    %507 = vector.multi_reduction <minimumf>, %506, %cst_157 [1] : vector<2x200xf32> to vector<2xf32>
    %508 = vector.shape_cast %507 : vector<2xf32> to vector<2x1xf32>
    %509 = vector.broadcast %508 : vector<2x1xf32> to vector<2x200xf32>
    %510 = arith.cmpf oeq, %506, %509 : vector<2x200xf32>
    %cst_158 = arith.constant 2.000000e+02 : f32
    %511 = vector.broadcast %cst_158 : f32 to vector<2x200xf32>
    %512 = arith.select %510, %3, %511 : vector<2x200xi1>, vector<2x200xf32>
    %cst_159 = arith.constant dense<0x7F800000> : vector<2xf32>
    %513 = vector.multi_reduction <minimumf>, %512, %cst_159 [1] : vector<2x200xf32> to vector<2xf32>
    %514 = vector.shape_cast %513 : vector<2xf32> to vector<2x1xf32>
    %515 = vector.broadcast %514 : vector<2x1xf32> to vector<2x200xf32>
    %516 = arith.cmpf oeq, %3, %515 : vector<2x200xf32>
    %517 = arith.ori %504, %516 : vector<2x200xi1>
    %518 = arith.andi %260, %517 : vector<2x200xi1>
    %cst_160 = arith.constant 1.000000e-01 : f32
    %519 = vector.broadcast %cst_160 : f32 to vector<2x200xf32>
    %520 = math.powf %0, %519 : vector<2x200xf32>
    %cst_161 = arith.constant 1.000000e-01 : f32
    %521 = vector.broadcast %cst_161 : f32 to vector<2x200xf32>
    %522 = math.powf %1, %521 : vector<2x200xf32>
    %523 = arith.addf %520, %522 : vector<2x200xf32>
    %cst_162 = arith.constant 2.000000e+00 : f32
    %524 = vector.broadcast %cst_162 : f32 to vector<2x200xf32>
    %525 = arith.divf %524, %523 : vector<2x200xf32>
    %cst_163 = arith.constant 0.000000e+00 : f32
    %526 = vector.broadcast %cst_163 : f32 to vector<2x200xf32>
    %527 = arith.select %518, %525, %526 : vector<2x200xi1>, vector<2x200xf32>
    %528 = vector.shape_cast %527 : vector<2x200xf32> to vector<1x2x200xf32>
    %cst_164 = arith.constant dense<0.000000e+00> : vector<1xf32>
    %529 = vector.multi_reduction <add>, %528, %cst_164 [1, 2] : vector<1x2x200xf32> to vector<1xf32>
    %530 = vector.shape_cast %529 : vector<1xf32> to vector<1x1x1xf32>
    %531 = vector.extract %530[0, 0, 0] : f32 from vector<1x1x1xf32>
    %532 = vector.broadcast %531 : f32 to vector<8x128xf32>
    %c0_165 = arith.constant 0 : index
    %c0_166 = arith.constant 0 : index
    %533 = vector.load %arg3[%c0_165, %c0_166] : memref<8x128xf32, #tpu.memory_space<vmem>>, vector<8x128xf32>
    tpu.vector_store %arg3[%c0_165, %c0_166], %532 {strides = array<i32>} : memref<8x128xf32, #tpu.memory_space<vmem>>, vector<8x128xf32>,
    return
  }
  func.func @transform_0(%arg0: i32) -> (i32, i32) {
    %c0_i32 = arith.constant 0 : i32
    %c0_i32_0 = arith.constant 0 : i32
    return %arg0, %c0_i32 : i32, i32
  }
  func.func @transform_1(%arg0: i32) -> (i32, i32) {
    %c0_i32 = arith.constant 0 : i32
    %c0_i32_0 = arith.constant 0 : i32
    return %arg0, %c0_i32 : i32, i32
  }
  func.func @transform_2(%arg0: i32) -> (i32, i32) {
    %c0_i32 = arith.constant 0 : i32
    %c0_i32_0 = arith.constant 0 : i32
    return %c0_i32, %arg0 : i32, i32
  }
}

</mosaic_0001>

<llo_original>
// kernel: tpu_custom_call.1
$region0: #{tpu_custom_call.1}
  #allocation0 [shape = 'u32[]', space=smem, size = 0x4, offset = 0x4, fixed_abs, tag = 'smem constant byte address 0x4 - core index']
  #allocation1 [shape = 'u32[144,128]{1,0:T(1,128)}', space=vmem, size = 0x12000, scoped, tag = 'internal scratch']
  %s0 = inlined_call_operand.hbm [shape: f32[2,200], index: 0, kind: input, shape index: {}]
  %s1 = inlined_call_operand.hbm [shape: f32[2,200], index: 1, kind: input, shape index: {}]
  %s2 = inlined_call_operand.hbm [shape: f32[8,128], index: 2, kind: output, shape index: {}]
  %s3 = sld [smem:[#allocation0]]
  $region26: #{tpu_custom_call.1} parent=0
    _
  %s5 = ssub.s32 1, %s3
  %s6 = scalar_select 0, %s5, %s3
  $region1: #{tpu_custom_call.1} parent=0
    #allocation2 [shape = 'u8[2048]{0}', space=vmem, size = 0x800, scoped, tag = 'input window, operand 0, single buffered']
    #allocation3 [shape = 's32[1]{0}', space=sflag, size = 0x4, scoped, tag = 'scoped memory for tpu_custom_call.1']
    #allocation4 [shape = 's32[1]{0}', space=sflag, size = 0x4, scoped, tag = 'scoped memory for tpu_custom_call.1']
    #allocation5 [shape = 'u8[2048]{0}', space=vmem, size = 0x800, scoped, tag = 'input window, operand 1, single buffered']
    #allocation6 [shape = 's32[1]{0}', space=sflag, size = 0x4, scoped, tag = 'scoped memory for tpu_custom_call.1']
    #allocation7 [shape = 'u8[4096]{0}', space=vmem, size = 0x1000, scoped, tag = 'output window, operand 0, single buffered']
    %7 = vsyncpa [#allocation3], 0
    %8 = vsyncpa [#allocation6], 0
    %9 = vsyncpa [#allocation4], 0
    // Predicated region
    $region2: #{tpu_custom_call.1} parent=1 // pred_check
      _
    $region3: #{tpu_custom_call.1} parent=1 // pred_check_branch
      %11 = sbr.rel (0) target = $region5
    $region4: #{tpu_custom_call.1} parent=1 // pred_region
      %s13 = ssub.s32 64, 64
      %14 = vsyncadd [#allocation3], %s13
      %s16 = sshll.u32 [#allocation2], 4
      %s17 = int_to_ptr.vmem [resolvable:$true] %s16
      %19 = dma.hbm_to_vmem [thread:$0]  %s0, 64, %s17, [#allocation3]
    $region5: #{tpu_custom_call.1} parent=1 // pred_fallthru
      _
    // Predicated region
    $region6: #{tpu_custom_call.1} parent=1 // pred_check
      _
    $region7: #{tpu_custom_call.1} parent=1 // pred_check_branch
      %21 = sbr.rel (0) target = $region9
    $region8: #{tpu_custom_call.1} parent=1 // pred_region
      %s23 = ssub.s32 64, 64
      %24 = vsyncadd [#allocation6], %s23
      %s26 = sshll.u32 [#allocation5], 4
      %s27 = int_to_ptr.vmem [resolvable:$true] %s26
      %29 = dma.hbm_to_vmem [thread:$0]  %s1, 64, %s27, [#allocation6]
    $region9: #{tpu_custom_call.1} parent=1 // pred_fallthru
      _
    // Predicated region
    $region10: #{tpu_custom_call.1} parent=1 // pred_check
      _
    $region11: #{tpu_custom_call.1} parent=1 // pred_check_branch
      %31 = sbr.rel (0) target = $region13
    $region12: #{tpu_custom_call.1} parent=1 // pred_region
      %32 = dma.done [#allocation3], 64
    $region13: #{tpu_custom_call.1} parent=1 // pred_fallthru
      _
    // Predicated region
    $region14: #{tpu_custom_call.1} parent=1 // pred_check
      _
    $region15: #{tpu_custom_call.1} parent=1 // pred_check_branch
      %34 = sbr.rel (0) target = $region17
    $region16: #{tpu_custom_call.1} parent=1 // pred_region
      %35 = dma.done [#allocation6], 64
    $region17: #{tpu_custom_call.1} parent=1 // pred_fallthru
      _
    %v36 = vld [vmem:[#allocation2] sm:$0xf]
    %v37 = vld [vmem:[#allocation5] sm:$0xf]
    %v38 = vlaneseq
    %v39 = vand.u32 %v38, 127
    %v40 = vadd.s32 %v39, 128
    %v41 = vcvt.s32.f32 %v39
    %v42 = vcvt.s32.f32 %v40
    %v45 = vunpack.c.l.s4 1983009808
    %v46 = vunpack.c.0.s8 %v45
    %v47 = vlaneseq
    %v48 = vshrl.u32 %v47, 7
    %v49 = vsub.s32 %v46, %v48
    %v50 = vrot.slane %v36, %v49
    %v51 = vcombine.high %v50, %v50
    %vm54 = vcmask 1041408
    %v55 = vsel %vm54, %v50, inf
    %vm56 = vcmask 582656
    %v57 = vsel %vm56, %v51, inf
    %v58 = vmin.f32 %v55, %v57
    %59 = vmin.xlane.f32.xlu0 %v58
    %v60 = vpop.xlane.xlu0 %59
    %v63 = vunpack.c.l.s4 269488144
    %v64 = vunpack.c.0.s8 %v63
    %v65 = vlaneseq
    %v66 = vshrl.u32 %v65, 7
    %v67 = vsub.s32 %v64, %v66
    %v68 = vrot.slane %v60, %v67
    %vm70 = vcmp.eq.f32.partialorder %v36, %v68
    %v73 = vcombine.low %v41, %v42
    %v75 = vunpack.c.l.s4 1983009808
    %v76 = vunpack.c.0.s8 %v75
    %v77 = vlaneseq
    %v78 = vshrl.u32 %v77, 7
    %v79 = vsub.s32 %v76, %v78
    %v80 = vrot.slane %v73, %v79
    %v82 = vsel %vm70, %v80, 200.0
    %v85 = vunpack.c.l.s4 1983009808
    %v86 = vunpack.c.0.s8 %v85
    %v87 = vlaneseq
    %v88 = vshrl.u32 %v87, 7
    %v89 = vsub.s32 %v86, %v88
    %v90 = vrot.slane %v82, %v89
    %v91 = vcombine.high %v90, %v90
    %v94 = vsel %vm54, %v90, inf
    %v95 = vsel %vm56, %v91, inf
    %v96 = vmin.f32 %v94, %v95
    %97 = vmin.xlane.f32.xlu0 %v96
    %v98 = vpop.xlane.xlu0 %97
    %vm99 = vcmp.eq.f32.partialorder %v41, %v98
    %vm100 = vcmp.eq.f32.partialorder %v42, %v98
    %v101 = vsel %vm99, inf, %v50
    %v102 = vsel %vm100, inf, %v51
    %v103 = vsel %vm54, %v101, inf
    %v104 = vsel %vm56, %v102, inf
    %v105 = vmin.f32 %v103, %v104
    %106 = vmin.xlane.f32.xlu0 %v105
    %v107 = vpop.xlane.xlu0 %106
    %vm108 = vcmp.eq.f32.partialorder %v101, %v107
    %vm109 = vcmp.eq.f32.partialorder %v102, %v107
    %v110 = vsel %vm108, %v41, 200.0
    %v111 = vsel %vm109, %v42, 200.0
    %v112 = vsel %vm54, %v110, inf
    %v113 = vsel %vm56, %v111, inf
    %v114 = vmin.f32 %v112, %v113
    %115 = vmin.xlane.f32.xlu0 %v114
    %v116 = vpop.xlane.xlu0 %115
    %vm117 = vcmp.eq.f32.partialorder %v41, %v116
    %vm118 = vcmp.eq.f32.partialorder %v42, %v116
    %vm119 = vmor %vm99, %vm117
    %vm120 = vmor %vm100, %vm118
    %v121 = vsel %vm119, inf, %v50
    %v122 = vsel %vm120, inf, %v51
    %v123 = vsel %vm54, %v121, inf
    %v124 = vsel %vm56, %v122, inf
    %v125 = vmin.f32 %v123, %v124
    %126 = vmin.xlane.f32.xlu0 %v125
    %v127 = vpop.xlane.xlu0 %126
    %vm128 = vcmp.eq.f32.partialorder %v121, %v127
    %vm129 = vcmp.eq.f32.partialorder %v122, %v127
    %v130 = vsel %vm128, %v41, 200.0
    %v131 = vsel %vm129, %v42, 200.0
    %v132 = vsel %vm54, %v130, inf
    %v133 = vsel %vm56, %v131, inf
    %v134 = vmin.f32 %v132, %v133
    %135 = vmin.xlane.f32.xlu0 %v134
    %v136 = vpop.xlane.xlu0 %135
    %vm137 = vcmp.eq.f32.partialorder %v41, %v136
    %vm138 = vcmp.eq.f32.partialorder %v42, %v136
    %vm139 = vmor %vm119, %vm137
    %vm140 = vmor %vm120, %vm138
    %v141 = vsel %vm139, inf, %v50
    %v142 = vsel %vm140, inf, %v51
    %v143 = vsel %vm54, %v141, inf
    %v144 = vsel %vm56, %v142, inf
    %v145 = vmin.f32 %v143, %v144
    %146 = vmin.xlane.f32.xlu0 %v145
    %v147 = vpop.xlane.xlu0 %146
    %vm148 = vcmp.eq.f32.partialorder %v141, %v147
    %vm149 = vcmp.eq.f32.partialorder %v142, %v147
    %v150 = vsel %vm148, %v41, 200.0
    %v151 = vsel %vm149, %v42, 200.0
    %v152 = vsel %vm54, %v150, inf
    %v153 = vsel %vm56, %v151, inf
    %v154 = vmin.f32 %v152, %v153
    %155 = vmin.xlane.f32.xlu0 %v154
    %v156 = vpop.xlane.xlu0 %155
    %vm157 = vcmp.eq.f32.partialorder %v41, %v156
    %vm158 = vcmp.eq.f32.partialorder %v42, %v156
    %vm159 = vmor %vm139, %vm157
    %vm160 = vmor %vm140, %vm158
    %v161 = vsel %vm159, inf, %v50
    %v162 = vsel %vm160, inf, %v51
    %v163 = vsel %vm54, %v161, inf
    %v164 = vsel %vm56, %v162, inf
    %v165 = vmin.f32 %v163, %v164
    %166 = vmin.xlane.f32.xlu0 %v165
    %v167 = vpop.xlane.xlu0 %166
    %vm168 = vcmp.eq.f32.partialorder %v161, %v167
    %vm169 = vcmp.eq.f32.partialorder %v162, %v167
    %v170 = vsel %vm168, %v41, 200.0
    %v171 = vsel %vm169, %v42, 200.0
    %v172 = vsel %vm54, %v170, inf
    %v173 = vsel %vm56, %v171, inf
    %v174 = vmin.f32 %v172, %v173
    %175 = vmin.xlane.f32.xlu0 %v174
    %v176 = vpop.xlane.xlu0 %175
    %vm177 = vcmp.eq.f32.partialorder %v41, %v176
    %vm178 = vcmp.eq.f32.partialorder %v42, %v176
    %vm179 = vmor %vm159, %vm177
    %vm180 = vmor %vm160, %vm178
    %v181 = vsel %vm179, inf, %v50
    %v182 = vsel %vm180, inf, %v51
    %v183 = vsel %vm54, %v181, inf
    %v184 = vsel %vm56, %v182, inf
    %v185 = vmin.f32 %v183, %v184
    %186 = vmin.xlane.f32.xlu0 %v185
    %v187 = vpop.xlane.xlu0 %186
    %vm188 = vcmp.eq.f32.partialorder %v181, %v187
    %vm189 = vcmp.eq.f32.partialorder %v182, %v187
    %v190 = vsel %vm188, %v41, 200.0
    %v191 = vsel %vm189, %v42, 200.0
    %v192 = vsel %vm54, %v190, inf
    %v193 = vsel %vm56, %v191, inf
    %v194 = vmin.f32 %v192, %v193
    %195 = vmin.xlane.f32.xlu0 %v194
    %v196 = vpop.xlane.xlu0 %195
    %vm197 = vcmp.eq.f32.partialorder %v41, %v196
    %vm198 = vcmp.eq.f32.partialorder %v42, %v196
    %vm199 = vmor %vm179, %vm197
    %vm200 = vmor %vm180, %vm198
    %v201 = vsel %vm199, inf, %v50
    %v202 = vsel %vm200, inf, %v51
    %v203 = vsel %vm54, %v201, inf
    %v204 = vsel %vm56, %v202, inf
    %v205 = vmin.f32 %v203, %v204
    %206 = vmin.xlane.f32.xlu0 %v205
    %v207 = vpop.xlane.xlu0 %206
    %vm208 = vcmp.eq.f32.partialorder %v201, %v207
    %vm209 = vcmp.eq.f32.partialorder %v202, %v207
    %v210 = vsel %vm208, %v41, 200.0
    %v211 = vsel %vm209, %v42, 200.0
    %v212 = vsel %vm54, %v210, inf
    %v213 = vsel %vm56, %v211, inf
    %v214 = vmin.f32 %v212, %v213
    %215 = vmin.xlane.f32.xlu0 %v214
    %v216 = vpop.xlane.xlu0 %215
    %vm217 = vcmp.eq.f32.partialorder %v41, %v216
    %vm218 = vcmp.eq.f32.partialorder %v42, %v216
    %vm219 = vmor %vm199, %vm217
    %vm220 = vmor %vm200, %vm218
    %v221 = vsel %vm219, inf, %v50
    %v222 = vsel %vm220, inf, %v51
    %v223 = vsel %vm54, %v221, inf
    %v224 = vsel %vm56, %v222, inf
    %v225 = vmin.f32 %v223, %v224
    %226 = vmin.xlane.f32.xlu0 %v225
    %v227 = vpop.xlane.xlu0 %226
    %vm228 = vcmp.eq.f32.partialorder %v221, %v227
    %vm229 = vcmp.eq.f32.partialorder %v222, %v227
    %v230 = vsel %vm228, %v41, 200.0
    %v231 = vsel %vm229, %v42, 200.0
    %v232 = vsel %vm54, %v230, inf
    %v233 = vsel %vm56, %v231, inf
    %v234 = vmin.f32 %v232, %v233
    %235 = vmin.xlane.f32.xlu0 %v234
    %v236 = vpop.xlane.xlu0 %235
    %vm237 = vcmp.eq.f32.partialorder %v41, %v236
    %vm238 = vcmp.eq.f32.partialorder %v42, %v236
    %vm239 = vmor %vm219, %vm237
    %vm240 = vmor %vm220, %vm238
    %v241 = vsel %vm239, inf, %v50
    %v242 = vsel %vm240, inf, %v51
    %v243 = vsel %vm54, %v241, inf
    %v244 = vsel %vm56, %v242, inf
    %v245 = vmin.f32 %v243, %v244
    %246 = vmin.xlane.f32.xlu0 %v245
    %v247 = vpop.xlane.xlu0 %246
    %vm248 = vcmp.eq.f32.partialorder %v241, %v247
    %vm249 = vcmp.eq.f32.partialorder %v242, %v247
    %v250 = vsel %vm248, %v41, 200.0
    %v251 = vsel %vm249, %v42, 200.0
    %v252 = vsel %vm54, %v250, inf
    %v253 = vsel %vm56, %v251, inf
    %v254 = vmin.f32 %v252, %v253
    %255 = vmin.xlane.f32.xlu0 %v254
    %v256 = vpop.xlane.xlu0 %255
    %vm257 = vcmp.eq.f32.partialorder %v41, %v256
    %vm258 = vcmp.eq.f32.partialorder %v42, %v256
    %vm259 = vmor %vm239, %vm257
    %vm260 = vmor %vm240, %vm258
    %v261 = vsel %vm259, inf, %v50
    %v262 = vsel %vm260, inf, %v51
    %v263 = vsel %vm54, %v261, inf
    %v264 = vsel %vm56, %v262, inf
    %v265 = vmin.f32 %v263, %v264
    %266 = vmin.xlane.f32.xlu0 %v265
    %v267 = vpop.xlane.xlu0 %266
    %vm268 = vcmp.eq.f32.partialorder %v261, %v267
    %vm269 = vcmp.eq.f32.partialorder %v262, %v267
    %v270 = vsel %vm268, %v41, 200.0
    %v271 = vsel %vm269, %v42, 200.0
    %v272 = vsel %vm54, %v270, inf
    %v273 = vsel %vm56, %v271, inf
    %v274 = vmin.f32 %v272, %v273
    %275 = vmin.xlane.f32.xlu0 %v274
    %v276 = vpop.xlane.xlu0 %275
    %vm277 = vcmp.eq.f32.partialorder %v41, %v276
    %vm278 = vcmp.eq.f32.partialorder %v42, %v276
    %vm279 = vmor %vm259, %vm277
    %vm280 = vmor %vm260, %vm278
    %v281 = vsel %vm279, inf, %v50
    %v282 = vsel %vm280, inf, %v51
    %v283 = vsel %vm54, %v281, inf
    %v284 = vsel %vm56, %v282, inf
    %v285 = vmin.f32 %v283, %v284
    %286 = vmin.xlane.f32.xlu0 %v285
    %v287 = vpop.xlane.xlu0 %286
    %vm288 = vcmp.eq.f32.partialorder %v281, %v287
    %vm289 = vcmp.eq.f32.partialorder %v282, %v287
    %v290 = vsel %vm288, %v41, 200.0
    %v291 = vsel %vm289, %v42, 200.0
    %v292 = vsel %vm54, %v290, inf
    %v293 = vsel %vm56, %v291, inf
    %v294 = vmin.f32 %v292, %v293
    %295 = vmin.xlane.f32.xlu0 %v294
    %v296 = vpop.xlane.xlu0 %295
    %vm297 = vcmp.eq.f32.partialorder %v41, %v296
    %vm298 = vcmp.eq.f32.partialorder %v42, %v296
    %vm299 = vmor %vm279, %vm297
    %vm300 = vmor %vm280, %vm298
    %v301 = vsel %vm299, inf, %v50
    %v302 = vsel %vm300, inf, %v51
    %v303 = vsel %vm54, %v301, inf
    %v304 = vsel %vm56, %v302, inf
    %v305 = vmin.f32 %v303, %v304
    %306 = vmin.xlane.f32.xlu0 %v305
    %v307 = vpop.xlane.xlu0 %306
    %vm308 = vcmp.eq.f32.partialorder %v301, %v307
    %vm309 = vcmp.eq.f32.partialorder %v302, %v307
    %v310 = vsel %vm308, %v41, 200.0
    %v311 = vsel %vm309, %v42, 200.0
    %v312 = vsel %vm54, %v310, inf
    %v313 = vsel %vm56, %v311, inf
    %v314 = vmin.f32 %v312, %v313
    %315 = vmin.xlane.f32.xlu0 %v314
    %v316 = vpop.xlane.xlu0 %315
    %vm317 = vcmp.eq.f32.partialorder %v41, %v316
    %vm318 = vcmp.eq.f32.partialorder %v42, %v316
    %vm319 = vmor %vm299, %vm317
    %vm320 = vmor %vm300, %vm318
    %v321 = vsel %vm319, inf, %v50
    %v322 = vsel %vm320, inf, %v51
    %v323 = vsel %vm54, %v321, inf
    %v324 = vsel %vm56, %v322, inf
    %v325 = vmin.f32 %v323, %v324
    %326 = vmin.xlane.f32.xlu0 %v325
    %v327 = vpop.xlane.xlu0 %326
    %vm328 = vcmp.eq.f32.partialorder %v321, %v327
    %vm329 = vcmp.eq.f32.partialorder %v322, %v327
    %v330 = vsel %vm328, %v41, 200.0
    %v331 = vsel %vm329, %v42, 200.0
    %v332 = vsel %vm54, %v330, inf
    %v333 = vsel %vm56, %v331, inf
    %v334 = vmin.f32 %v332, %v333
    %335 = vmin.xlane.f32.xlu0 %v334
    %v336 = vpop.xlane.xlu0 %335
    %vm337 = vcmp.eq.f32.partialorder %v41, %v336
    %vm338 = vcmp.eq.f32.partialorder %v42, %v336
    %vm339 = vmor %vm319, %vm337
    %vm340 = vmor %vm320, %vm338
    %v341 = vsel %vm339, inf, %v50
    %v342 = vsel %vm340, inf, %v51
    %v343 = vsel %vm54, %v341, inf
    %v344 = vsel %vm56, %v342, inf
    %v345 = vmin.f32 %v343, %v344
    %346 = vmin.xlane.f32.xlu0 %v345
    %v347 = vpop.xlane.xlu0 %346
    %vm348 = vcmp.eq.f32.partialorder %v341, %v347
    %vm349 = vcmp.eq.f32.partialorder %v342, %v347
    %v350 = vsel %vm348, %v41, 200.0
    %v351 = vsel %vm349, %v42, 200.0
    %v352 = vsel %vm54, %v350, inf
    %v353 = vsel %vm56, %v351, inf
    %v354 = vmin.f32 %v352, %v353
    %355 = vmin.xlane.f32.xlu0 %v354
    %v356 = vpop.xlane.xlu0 %355
    %vm357 = vcmp.eq.f32.partialorder %v41, %v356
    %vm358 = vcmp.eq.f32.partialorder %v42, %v356
    %vm359 = vmor %vm339, %vm357
    %vm360 = vmor %vm340, %vm358
    %v361 = vsel %vm359, inf, %v50
    %v362 = vsel %vm360, inf, %v51
    %v363 = vsel %vm54, %v361, inf
    %v364 = vsel %vm56, %v362, inf
    %v365 = vmin.f32 %v363, %v364
    %366 = vmin.xlane.f32.xlu0 %v365
    %v367 = vpop.xlane.xlu0 %366
    %vm368 = vcmp.eq.f32.partialorder %v361, %v367
    %vm369 = vcmp.eq.f32.partialorder %v362, %v367
    %v370 = vsel %vm368, %v41, 200.0
    %v371 = vsel %vm369, %v42, 200.0
    %v372 = vsel %vm54, %v370, inf
    %v373 = vsel %vm56, %v371, inf
    %v374 = vmin.f32 %v372, %v373
    %375 = vmin.xlane.f32.xlu0 %v374
    %v376 = vpop.xlane.xlu0 %375
    %vm377 = vcmp.eq.f32.partialorder %v41, %v376
    %vm378 = vcmp.eq.f32.partialorder %v42, %v376
    %vm379 = vmor %vm359, %vm377
    %vm380 = vmor %vm360, %vm378
    %v381 = vsel %vm379, inf, %v50
    %v382 = vsel %vm380, inf, %v51
    %v383 = vsel %vm54, %v381, inf
    %v384 = vsel %vm56, %v382, inf
    %v385 = vmin.f32 %v383, %v384
    %386 = vmin.xlane.f32.xlu0 %v385
    %v387 = vpop.xlane.xlu0 %386
    %vm388 = vcmp.eq.f32.partialorder %v381, %v387
    %vm389 = vcmp.eq.f32.partialorder %v382, %v387
    %v390 = vsel %vm388, %v41, 200.0
    %v391 = vsel %vm389, %v42, 200.0
    %v392 = vsel %vm54, %v390, inf
    %v393 = vsel %vm56, %v391, inf
    %v394 = vmin.f32 %v392, %v393
    %395 = vmin.xlane.f32.xlu0 %v394
    %v396 = vpop.xlane.xlu0 %395
    %vm397 = vcmp.eq.f32.partialorder %v41, %v396
    %vm398 = vcmp.eq.f32.partialorder %v42, %v396
    %vm399 = vmor %vm379, %vm397
    %vm400 = vmor %vm380, %vm398
    %v401 = vsel %vm399, inf, %v50
    %v402 = vsel %vm400, inf, %v51
    %v403 = vsel %vm54, %v401, inf
    %v404 = vsel %vm56, %v402, inf
    %v405 = vmin.f32 %v403, %v404
    %406 = vmin.xlane.f32.xlu0 %v405
    %v407 = vpop.xlane.xlu0 %406
    %vm408 = vcmp.eq.f32.partialorder %v401, %v407
    %vm409 = vcmp.eq.f32.partialorder %v402, %v407
    %v410 = vsel %vm408, %v41, 200.0
    %v411 = vsel %vm409, %v42, 200.0
    %v412 = vsel %vm54, %v410, inf
    %v413 = vsel %vm56, %v411, inf
    %v414 = vmin.f32 %v412, %v413
    %415 = vmin.xlane.f32.xlu0 %v414
    %v416 = vpop.xlane.xlu0 %415
    %vm417 = vcmp.eq.f32.partialorder %v41, %v416
    %vm418 = vcmp.eq.f32.partialorder %v42, %v416
    %vm419 = vmor %vm399, %vm417
    %vm420 = vmor %vm400, %vm418
    %v421 = vsel %vm419, inf, %v50
    %v422 = vsel %vm420, inf, %v51
    %v423 = vsel %vm54, %v421, inf
    %v424 = vsel %vm56, %v422, inf
    %v425 = vmin.f32 %v423, %v424
    %426 = vmin.xlane.f32.xlu0 %v425
    %v427 = vpop.xlane.xlu0 %426
    %vm428 = vcmp.eq.f32.partialorder %v421, %v427
    %vm429 = vcmp.eq.f32.partialorder %v422, %v427
    %v430 = vsel %vm428, %v41, 200.0
    %v431 = vsel %vm429, %v42, 200.0
    %v432 = vsel %vm54, %v430, inf
    %v433 = vsel %vm56, %v431, inf
    %v434 = vmin.f32 %v432, %v433
    %435 = vmin.xlane.f32.xlu0 %v434
    %v436 = vpop.xlane.xlu0 %435
    %vm437 = vcmp.eq.f32.partialorder %v41, %v436
    %vm438 = vcmp.eq.f32.partialorder %v42, %v436
    %vm439 = vmor %vm419, %vm437
    %vm440 = vmor %vm420, %vm438
    %v441 = vsel %vm439, inf, %v50
    %v442 = vsel %vm440, inf, %v51
    %v443 = vsel %vm54, %v441, inf
    %v444 = vsel %vm56, %v442, inf
    %v445 = vmin.f32 %v443, %v444
    %446 = vmin.xlane.f32.xlu0 %v445
    %v447 = vpop.xlane.xlu0 %446
    %vm448 = vcmp.eq.f32.partialorder %v441, %v447
    %vm449 = vcmp.eq.f32.partialorder %v442, %v447
    %v450 = vsel %vm448, %v41, 200.0
    %v451 = vsel %vm449, %v42, 200.0
    %v452 = vsel %vm54, %v450, inf
    %v453 = vsel %vm56, %v451, inf
    %v454 = vmin.f32 %v452, %v453
    %455 = vmin.xlane.f32.xlu0 %v454
    %v456 = vpop.xlane.xlu0 %455
    %vm457 = vcmp.eq.f32.partialorder %v41, %v456
    %vm458 = vcmp.eq.f32.partialorder %v42, %v456
    %vm459 = vmor %vm439, %vm457
    %vm460 = vmor %vm440, %vm458
    %v461 = vsel %vm459, inf, %v50
    %v462 = vsel %vm460, inf, %v51
    %v463 = vsel %vm54, %v461, inf
    %v464 = vsel %vm56, %v462, inf
    %v465 = vmin.f32 %v463, %v464
    %466 = vmin.xlane.f32.xlu0 %v465
    %v467 = vpop.xlane.xlu0 %466
    %vm468 = vcmp.eq.f32.partialorder %v461, %v467
    %vm469 = vcmp.eq.f32.partialorder %v462, %v467
    %v470 = vsel %vm468, %v41, 200.0
    %v471 = vsel %vm469, %v42, 200.0
    %v472 = vsel %vm54, %v470, inf
    %v473 = vsel %vm56, %v471, inf
    %v474 = vmin.f32 %v472, %v473
    %475 = vmin.xlane.f32.xlu0 %v474
    %v476 = vpop.xlane.xlu0 %475
    %vm477 = vcmp.eq.f32.partialorder %v41, %v476
    %vm478 = vcmp.eq.f32.partialorder %v42, %v476
    %vm479 = vmor %vm459, %vm477
    %vm480 = vmor %vm460, %vm478
    %v483 = vunpack.c.l.s4 1983009808
    %v484 = vunpack.c.0.s8 %v483
    %v485 = vlaneseq
    %v486 = vshrl.u32 %v485, 7
    %v487 = vsub.s32 %v484, %v486
    %v488 = vrot.slane %v37, %v487
    %v489 = vcombine.high %v488, %v488
    %v492 = vsel %vm54, %v488, inf
    %v493 = vsel %vm56, %v489, inf
    %v494 = vmin.f32 %v492, %v493
    %495 = vmin.xlane.f32.xlu0 %v494
    %v496 = vpop.xlane.xlu0 %495
    %v499 = vunpack.c.l.s4 269488144
    %v500 = vunpack.c.0.s8 %v499
    %v501 = vlaneseq
    %v502 = vshrl.u32 %v501, 7
    %v503 = vsub.s32 %v500, %v502
    %v504 = vrot.slane %v496, %v503
    %vm506 = vcmp.eq.f32.partialorder %v37, %v504
    %v507 = vsel %vm506, %v80, 200.0
    %v510 = vunpack.c.l.s4 1983009808
    %v511 = vunpack.c.0.s8 %v510
    %v512 = vlaneseq
    %v513 = vshrl.u32 %v512, 7
    %v514 = vsub.s32 %v511, %v513
    %v515 = vrot.slane %v507, %v514
    %v516 = vcombine.high %v515, %v515
    %v519 = vsel %vm54, %v515, inf
    %v520 = vsel %vm56, %v516, inf
    %v521 = vmin.f32 %v519, %v520
    %522 = vmin.xlane.f32.xlu0 %v521
    %v523 = vpop.xlane.xlu0 %522
    %vm524 = vcmp.eq.f32.partialorder %v41, %v523
    %vm525 = vcmp.eq.f32.partialorder %v42, %v523
    %v526 = vsel %vm524, inf, %v488
    %v527 = vsel %vm525, inf, %v489
    %v528 = vsel %vm54, %v526, inf
    %v529 = vsel %vm56, %v527, inf
    %v530 = vmin.f32 %v528, %v529
    %531 = vmin.xlane.f32.xlu0 %v530
    %v532 = vpop.xlane.xlu0 %531
    %vm533 = vcmp.eq.f32.partialorder %v526, %v532
    %vm534 = vcmp.eq.f32.partialorder %v527, %v532
    %v535 = vsel %vm533, %v41, 200.0
    %v536 = vsel %vm534, %v42, 200.0
    %v537 = vsel %vm54, %v535, inf
    %v538 = vsel %vm56, %v536, inf
    %v539 = vmin.f32 %v537, %v538
    %540 = vmin.xlane.f32.xlu0 %v539
    %v541 = vpop.xlane.xlu0 %540
    %vm542 = vcmp.eq.f32.partialorder %v41, %v541
    %vm543 = vcmp.eq.f32.partialorder %v42, %v541
    %vm544 = vmor %vm524, %vm542
    %vm545 = vmor %vm525, %vm543
    %v546 = vsel %vm544, inf, %v488
    %v547 = vsel %vm545, inf, %v489
    %v548 = vsel %vm54, %v546, inf
    %v549 = vsel %vm56, %v547, inf
    %v550 = vmin.f32 %v548, %v549
    %551 = vmin.xlane.f32.xlu0 %v550
    %v552 = vpop.xlane.xlu0 %551
    %vm553 = vcmp.eq.f32.partialorder %v546, %v552
    %vm554 = vcmp.eq.f32.partialorder %v547, %v552
    %v555 = vsel %vm553, %v41, 200.0
    %v556 = vsel %vm554, %v42, 200.0
    %v557 = vsel %vm54, %v555, inf
    %v558 = vsel %vm56, %v556, inf
    %v559 = vmin.f32 %v557, %v558
    %560 = vmin.xlane.f32.xlu0 %v559
    %v561 = vpop.xlane.xlu0 %560
    %vm562 = vcmp.eq.f32.partialorder %v41, %v561
    %vm563 = vcmp.eq.f32.partialorder %v42, %v561
    %vm564 = vmor %vm544, %vm562
    %vm565 = vmor %vm545, %vm563
    %v566 = vsel %vm564, inf, %v488
    %v567 = vsel %vm565, inf, %v489
    %v568 = vsel %vm54, %v566, inf
    %v569 = vsel %vm56, %v567, inf
    %v570 = vmin.f32 %v568, %v569
    %571 = vmin.xlane.f32.xlu0 %v570
    %v572 = vpop.xlane.xlu0 %571
    %vm573 = vcmp.eq.f32.partialorder %v566, %v572
    %vm574 = vcmp.eq.f32.partialorder %v567, %v572
    %v575 = vsel %vm573, %v41, 200.0
    %v576 = vsel %vm574, %v42, 200.0
    %v577 = vsel %vm54, %v575, inf
    %v578 = vsel %vm56, %v576, inf
    %v579 = vmin.f32 %v577, %v578
    %580 = vmin.xlane.f32.xlu0 %v579
    %v581 = vpop.xlane.xlu0 %580
    %vm582 = vcmp.eq.f32.partialorder %v41, %v581
    %vm583 = vcmp.eq.f32.partialorder %v42, %v581
    %vm584 = vmor %vm564, %vm582
    %vm585 = vmor %vm565, %vm583
    %v586 = vsel %vm584, inf, %v488
    %v587 = vsel %vm585, inf, %v489
    %v588 = vsel %vm54, %v586, inf
    %v589 = vsel %vm56, %v587, inf
    %v590 = vmin.f32 %v588, %v589
    %591 = vmin.xlane.f32.xlu0 %v590
    %v592 = vpop.xlane.xlu0 %591
    %vm593 = vcmp.eq.f32.partialorder %v586, %v592
    %vm594 = vcmp.eq.f32.partialorder %v587, %v592
    %v595 = vsel %vm593, %v41, 200.0
    %v596 = vsel %vm594, %v42, 200.0
    %v597 = vsel %vm54, %v595, inf
    %v598 = vsel %vm56, %v596, inf
    %v599 = vmin.f32 %v597, %v598
    %600 = vmin.xlane.f32.xlu0 %v599
    %v601 = vpop.xlane.xlu0 %600
    %vm602 = vcmp.eq.f32.partialorder %v41, %v601
    %vm603 = vcmp.eq.f32.partialorder %v42, %v601
    %vm604 = vmor %vm584, %vm602
    %vm605 = vmor %vm585, %vm603
    %v606 = vsel %vm604, inf, %v488
    %v607 = vsel %vm605, inf, %v489
    %v608 = vsel %vm54, %v606, inf
    %v609 = vsel %vm56, %v607, inf
    %v610 = vmin.f32 %v608, %v609
    %611 = vmin.xlane.f32.xlu0 %v610
    %v612 = vpop.xlane.xlu0 %611
    %vm613 = vcmp.eq.f32.partialorder %v606, %v612
    %vm614 = vcmp.eq.f32.partialorder %v607, %v612
    %v615 = vsel %vm613, %v41, 200.0
    %v616 = vsel %vm614, %v42, 200.0
    %v617 = vsel %vm54, %v615, inf
    %v618 = vsel %vm56, %v616, inf
    %v619 = vmin.f32 %v617, %v618
    %620 = vmin.xlane.f32.xlu0 %v619
    %v621 = vpop.xlane.xlu0 %620
    %vm622 = vcmp.eq.f32.partialorder %v41, %v621
    %vm623 = vcmp.eq.f32.partialorder %v42, %v621
    %vm624 = vmor %vm604, %vm622
    %vm625 = vmor %vm605, %vm623
    %v626 = vsel %vm624, inf, %v488
    %v627 = vsel %vm625, inf, %v489
    %v628 = vsel %vm54, %v626, inf
    %v629 = vsel %vm56, %v627, inf
    %v630 = vmin.f32 %v628, %v629
    %631 = vmin.xlane.f32.xlu0 %v630
    %v632 = vpop.xlane.xlu0 %631
    %vm633 = vcmp.eq.f32.partialorder %v626, %v632
    %vm634 = vcmp.eq.f32.partialorder %v627, %v632
    %v635 = vsel %vm633, %v41, 200.0
    %v636 = vsel %vm634, %v42, 200.0
    %v637 = vsel %vm54, %v635, inf
    %v638 = vsel %vm56, %v636, inf
    %v639 = vmin.f32 %v637, %v638
    %640 = vmin.xlane.f32.xlu0 %v639
    %v641 = vpop.xlane.xlu0 %640
    %vm642 = vcmp.eq.f32.partialorder %v41, %v641
    %vm643 = vcmp.eq.f32.partialorder %v42, %v641
    %vm644 = vmor %vm624, %vm642
    %vm645 = vmor %vm625, %vm643
    %v646 = vsel %vm644, inf, %v488
    %v647 = vsel %vm645, inf, %v489
    %v648 = vsel %vm54, %v646, inf
    %v649 = vsel %vm56, %v647, inf
    %v650 = vmin.f32 %v648, %v649
    %651 = vmin.xlane.f32.xlu0 %v650
    %v652 = vpop.xlane.xlu0 %651
    %vm653 = vcmp.eq.f32.partialorder %v646, %v652
    %vm654 = vcmp.eq.f32.partialorder %v647, %v652
    %v655 = vsel %vm653, %v41, 200.0
    %v656 = vsel %vm654, %v42, 200.0
    %v657 = vsel %vm54, %v655, inf
    %v658 = vsel %vm56, %v656, inf
    %v659 = vmin.f32 %v657, %v658
    %660 = vmin.xlane.f32.xlu0 %v659
    %v661 = vpop.xlane.xlu0 %660
    %vm662 = vcmp.eq.f32.partialorder %v41, %v661
    %vm663 = vcmp.eq.f32.partialorder %v42, %v661
    %vm664 = vmor %vm644, %vm662
    %vm665 = vmor %vm645, %vm663
    %v666 = vsel %vm664, inf, %v488
    %v667 = vsel %vm665, inf, %v489
    %v668 = vsel %vm54, %v666, inf
    %v669 = vsel %vm56, %v667, inf
    %v670 = vmin.f32 %v668, %v669
    %671 = vmin.xlane.f32.xlu0 %v670
    %v672 = vpop.xlane.xlu0 %671
    %vm673 = vcmp.eq.f32.partialorder %v666, %v672
    %vm674 = vcmp.eq.f32.partialorder %v667, %v672
    %v675 = vsel %vm673, %v41, 200.0
    %v676 = vsel %vm674, %v42, 200.0
    %v677 = vsel %vm54, %v675, inf
    %v678 = vsel %vm56, %v676, inf
    %v679 = vmin.f32 %v677, %v678
    %680 = vmin.xlane.f32.xlu0 %v679
    %v681 = vpop.xlane.xlu0 %680
    %vm682 = vcmp.eq.f32.partialorder %v41, %v681
    %vm683 = vcmp.eq.f32.partialorder %v42, %v681
    %vm684 = vmor %vm664, %vm682
    %vm685 = vmor %vm665, %vm683
    %v686 = vsel %vm684, inf, %v488
    %v687 = vsel %vm685, inf, %v489
    %v688 = vsel %vm54, %v686, inf
    %v689 = vsel %vm56, %v687, inf
    %v690 = vmin.f32 %v688, %v689
    %691 = vmin.xlane.f32.xlu0 %v690
    %v692 = vpop.xlane.xlu0 %691
    %vm693 = vcmp.eq.f32.partialorder %v686, %v692
    %vm694 = vcmp.eq.f32.partialorder %v687, %v692
    %v695 = vsel %vm693, %v41, 200.0
    %v696 = vsel %vm694, %v42, 200.0
    %v697 = vsel %vm54, %v695, inf
    %v698 = vsel %vm56, %v696, inf
    %v699 = vmin.f32 %v697, %v698
    %700 = vmin.xlane.f32.xlu0 %v699
    %v701 = vpop.xlane.xlu0 %700
    %vm702 = vcmp.eq.f32.partialorder %v41, %v701
    %vm703 = vcmp.eq.f32.partialorder %v42, %v701
    %vm704 = vmor %vm684, %vm702
    %vm705 = vmor %vm685, %vm703
    %v706 = vsel %vm704, inf, %v488
    %v707 = vsel %vm705, inf, %v489
    %v708 = vsel %vm54, %v706, inf
    %v709 = vsel %vm56, %v707, inf
    %v710 = vmin.f32 %v708, %v709
    %711 = vmin.xlane.f32.xlu0 %v710
    %v712 = vpop.xlane.xlu0 %711
    %vm713 = vcmp.eq.f32.partialorder %v706, %v712
    %vm714 = vcmp.eq.f32.partialorder %v707, %v712
    %v715 = vsel %vm713, %v41, 200.0
    %v716 = vsel %vm714, %v42, 200.0
    %v717 = vsel %vm54, %v715, inf
    %v718 = vsel %vm56, %v716, inf
    %v719 = vmin.f32 %v717, %v718
    %720 = vmin.xlane.f32.xlu0 %v719
    %v721 = vpop.xlane.xlu0 %720
    %vm722 = vcmp.eq.f32.partialorder %v41, %v721
    %vm723 = vcmp.eq.f32.partialorder %v42, %v721
    %vm724 = vmor %vm704, %vm722
    %vm725 = vmor %vm705, %vm723
    %v726 = vsel %vm724, inf, %v488
    %v727 = vsel %vm725, inf, %v489
    %v728 = vsel %vm54, %v726, inf
    %v729 = vsel %vm56, %v727, inf
    %v730 = vmin.f32 %v728, %v729
    %731 = vmin.xlane.f32.xlu0 %v730
    %v732 = vpop.xlane.xlu0 %731
    %vm733 = vcmp.eq.f32.partialorder %v726, %v732
    %vm734 = vcmp.eq.f32.partialorder %v727, %v732
    %v735 = vsel %vm733, %v41, 200.0
    %v736 = vsel %vm734, %v42, 200.0
    %v737 = vsel %vm54, %v735, inf
    %v738 = vsel %vm56, %v736, inf
    %v739 = vmin.f32 %v737, %v738
    %740 = vmin.xlane.f32.xlu0 %v739
    %v741 = vpop.xlane.xlu0 %740
    %vm742 = vcmp.eq.f32.partialorder %v41, %v741
    %vm743 = vcmp.eq.f32.partialorder %v42, %v741
    %vm744 = vmor %vm724, %vm742
    %vm745 = vmor %vm725, %vm743
    %v746 = vsel %vm744, inf, %v488
    %v747 = vsel %vm745, inf, %v489
    %v748 = vsel %vm54, %v746, inf
    %v749 = vsel %vm56, %v747, inf
    %v750 = vmin.f32 %v748, %v749
    %751 = vmin.xlane.f32.xlu0 %v750
    %v752 = vpop.xlane.xlu0 %751
    %vm753 = vcmp.eq.f32.partialorder %v746, %v752
    %vm754 = vcmp.eq.f32.partialorder %v747, %v752
    %v755 = vsel %vm753, %v41, 200.0
    %v756 = vsel %vm754, %v42, 200.0
    %v757 = vsel %vm54, %v755, inf
    %v758 = vsel %vm56, %v756, inf
    %v759 = vmin.f32 %v757, %v758
    %760 = vmin.xlane.f32.xlu0 %v759
    %v761 = vpop.xlane.xlu0 %760
    %vm762 = vcmp.eq.f32.partialorder %v41, %v761
    %vm763 = vcmp.eq.f32.partialorder %v42, %v761
    %vm764 = vmor %vm744, %vm762
    %vm765 = vmor %vm745, %vm763
    %v766 = vsel %vm764, inf, %v488
    %v767 = vsel %vm765, inf, %v489
    %v768 = vsel %vm54, %v766, inf
    %v769 = vsel %vm56, %v767, inf
    %v770 = vmin.f32 %v768, %v769
    %771 = vmin.xlane.f32.xlu0 %v770
    %v772 = vpop.xlane.xlu0 %771
    %vm773 = vcmp.eq.f32.partialorder %v766, %v772
    %vm774 = vcmp.eq.f32.partialorder %v767, %v772
    %v775 = vsel %vm773, %v41, 200.0
    %v776 = vsel %vm774, %v42, 200.0
    %v777 = vsel %vm54, %v775, inf
    %v778 = vsel %vm56, %v776, inf
    %v779 = vmin.f32 %v777, %v778
    %780 = vmin.xlane.f32.xlu0 %v779
    %v781 = vpop.xlane.xlu0 %780
    %vm782 = vcmp.eq.f32.partialorder %v41, %v781
    %vm783 = vcmp.eq.f32.partialorder %v42, %v781
    %vm784 = vmor %vm764, %vm782
    %vm785 = vmor %vm765, %vm783
    %v786 = vsel %vm784, inf, %v488
    %v787 = vsel %vm785, inf, %v489
    %v788 = vsel %vm54, %v786, inf
    %v789 = vsel %vm56, %v787, inf
    %v790 = vmin.f32 %v788, %v789
    %791 = vmin.xlane.f32.xlu0 %v790
    %v792 = vpop.xlane.xlu0 %791
    %vm793 = vcmp.eq.f32.partialorder %v786, %v792
    %vm794 = vcmp.eq.f32.partialorder %v787, %v792
    %v795 = vsel %vm793, %v41, 200.0
    %v796 = vsel %vm794, %v42, 200.0
    %v797 = vsel %vm54, %v795, inf
    %v798 = vsel %vm56, %v796, inf
    %v799 = vmin.f32 %v797, %v798
    %800 = vmin.xlane.f32.xlu0 %v799
    %v801 = vpop.xlane.xlu0 %800
    %vm802 = vcmp.eq.f32.partialorder %v41, %v801
    %vm803 = vcmp.eq.f32.partialorder %v42, %v801
    %vm804 = vmor %vm784, %vm802
    %vm805 = vmor %vm785, %vm803
    %v806 = vsel %vm804, inf, %v488
    %v807 = vsel %vm805, inf, %v489
    %v808 = vsel %vm54, %v806, inf
    %v809 = vsel %vm56, %v807, inf
    %v810 = vmin.f32 %v808, %v809
    %811 = vmin.xlane.f32.xlu0 %v810
    %v812 = vpop.xlane.xlu0 %811
    %vm813 = vcmp.eq.f32.partialorder %v806, %v812
    %vm814 = vcmp.eq.f32.partialorder %v807, %v812
    %v815 = vsel %vm813, %v41, 200.0
    %v816 = vsel %vm814, %v42, 200.0
    %v817 = vsel %vm54, %v815, inf
    %v818 = vsel %vm56, %v816, inf
    %v819 = vmin.f32 %v817, %v818
    %820 = vmin.xlane.f32.xlu0 %v819
    %v821 = vpop.xlane.xlu0 %820
    %vm822 = vcmp.eq.f32.partialorder %v41, %v821
    %vm823 = vcmp.eq.f32.partialorder %v42, %v821
    %vm824 = vmor %vm804, %vm822
    %vm825 = vmor %vm805, %vm823
    %v826 = vsel %vm824, inf, %v488
    %v827 = vsel %vm825, inf, %v489
    %v828 = vsel %vm54, %v826, inf
    %v829 = vsel %vm56, %v827, inf
    %v830 = vmin.f32 %v828, %v829
    %831 = vmin.xlane.f32.xlu0 %v830
    %v832 = vpop.xlane.xlu0 %831
    %vm833 = vcmp.eq.f32.partialorder %v826, %v832
    %vm834 = vcmp.eq.f32.partialorder %v827, %v832
    %v835 = vsel %vm833, %v41, 200.0
    %v836 = vsel %vm834, %v42, 200.0
    %v837 = vsel %vm54, %v835, inf
    %v838 = vsel %vm56, %v836, inf
    %v839 = vmin.f32 %v837, %v838
    %840 = vmin.xlane.f32.xlu0 %v839
    %v841 = vpop.xlane.xlu0 %840
    %vm842 = vcmp.eq.f32.partialorder %v41, %v841
    %vm843 = vcmp.eq.f32.partialorder %v42, %v841
    %vm844 = vmor %vm824, %vm842
    %vm845 = vmor %vm825, %vm843
    %v846 = vsel %vm844, inf, %v488
    %v847 = vsel %vm845, inf, %v489
    %v848 = vsel %vm54, %v846, inf
    %v849 = vsel %vm56, %v847, inf
    %v850 = vmin.f32 %v848, %v849
    %851 = vmin.xlane.f32.xlu0 %v850
    %v852 = vpop.xlane.xlu0 %851
    %vm853 = vcmp.eq.f32.partialorder %v846, %v852
    %vm854 = vcmp.eq.f32.partialorder %v847, %v852
    %v855 = vsel %vm853, %v41, 200.0
    %v856 = vsel %vm854, %v42, 200.0
    %v857 = vsel %vm54, %v855, inf
    %v858 = vsel %vm56, %v856, inf
    %v859 = vmin.f32 %v857, %v858
    %860 = vmin.xlane.f32.xlu0 %v859
    %v861 = vpop.xlane.xlu0 %860
    %vm862 = vcmp.eq.f32.partialorder %v41, %v861
    %vm863 = vcmp.eq.f32.partialorder %v42, %v861
    %vm864 = vmor %vm844, %vm862
    %vm865 = vmor %vm845, %vm863
    %v866 = vsel %vm864, inf, %v488
    %v867 = vsel %vm865, inf, %v489
    %v868 = vsel %vm54, %v866, inf
    %v869 = vsel %vm56, %v867, inf
    %v870 = vmin.f32 %v868, %v869
    %871 = vmin.xlane.f32.xlu0 %v870
    %v872 = vpop.xlane.xlu0 %871
    %vm873 = vcmp.eq.f32.partialorder %v866, %v872
    %vm874 = vcmp.eq.f32.partialorder %v867, %v872
    %v875 = vsel %vm873, %v41, 200.0
    %v876 = vsel %vm874, %v42, 200.0
    %v877 = vsel %vm54, %v875, inf
    %v878 = vsel %vm56, %v876, inf
    %v879 = vmin.f32 %v877, %v878
    %880 = vmin.xlane.f32.xlu0 %v879
    %v881 = vpop.xlane.xlu0 %880
    %vm882 = vcmp.eq.f32.partialorder %v41, %v881
    %vm883 = vcmp.eq.f32.partialorder %v42, %v881
    %vm884 = vmor %vm864, %vm882
    %vm885 = vmor %vm865, %vm883
    %v886 = vsel %vm884, inf, %v488
    %v887 = vsel %vm885, inf, %v489
    %v888 = vsel %vm54, %v886, inf
    %v889 = vsel %vm56, %v887, inf
    %v890 = vmin.f32 %v888, %v889
    %891 = vmin.xlane.f32.xlu0 %v890
    %v892 = vpop.xlane.xlu0 %891
    %vm893 = vcmp.eq.f32.partialorder %v886, %v892
    %vm894 = vcmp.eq.f32.partialorder %v887, %v892
    %v895 = vsel %vm893, %v41, 200.0
    %v896 = vsel %vm894, %v42, 200.0
    %v897 = vsel %vm54, %v895, inf
    %v898 = vsel %vm56, %v896, inf
    %v899 = vmin.f32 %v897, %v898
    %900 = vmin.xlane.f32.xlu0 %v899
    %v901 = vpop.xlane.xlu0 %900
    %vm902 = vcmp.eq.f32.partialorder %v41, %v901
    %vm903 = vcmp.eq.f32.partialorder %v42, %v901
    %vm904 = vmor %vm884, %vm902
    %vm905 = vmor %vm885, %vm903
    %vm906 = vmand %vm479, %vm904
    %vm907 = vmand %vm480, %vm905
    %v908 = vpow.f32 %v36, 0.1
    %v909 = vpow.f32 %v37, 0.1
    %v910 = vadd.f32 %v908, %v909
    %v911 = vrcp.pop %v910
    %v912 = vmul.f32 2.0, %v911
    %v915 = vunpack.c.l.s4 1983009808
    %v916 = vunpack.c.0.s8 %v915
    %v917 = vlaneseq
    %v918 = vshrl.u32 %v917, 7
    %v919 = vsub.s32 %v916, %v918
    %v920 = vrot.slane %v912, %v919
    %v921 = vcombine.high %v920, %v920
    %v924 = vsel %vm906, %v920, 0.0
    %v925 = vsel %vm907, %v921, 0.0
    %v926 = vsel %vm54, %v924, 0.0
    %v927 = vsel %vm56, %v925, 0.0
    %v928 = vadd.f32 %v926, %v927
    %929 = vadd.xlane.f32.xlu0 %v928
    %v930 = vpop.xlane.xlu0 %929
    %v931 = vrot.slane %v930, 4
    %v932 = vadd.f32 %v930, %v931
    %v933 = vrot.slane %v932, 2
    %v934 = vadd.f32 %v932, %v933
    %v935 = vrot.slane %v934, 1
    %v936 = vadd.f32 %v934, %v935
    %s937 = vtos %v936
    %v938 = vstv %s937
    %939 = vst [vmem:[#allocation7] sm:$0xff] %v938
    // Predicated region
    $region18: #{tpu_custom_call.1} parent=1 // pred_check
      _
    $region19: #{tpu_custom_call.1} parent=1 // pred_check_branch
      %941 = sbr.rel (0) target = $region21
    $region20: #{tpu_custom_call.1} parent=1 // pred_region
      %s943 = ssub.s32 128, 128
      %944 = vsyncadd [#allocation4], %s943
      %s946 = sshll.u32 [#allocation7], 4
      %s947 = int_to_ptr.vmem [resolvable:$true] %s946
      %949 = dma.vmem_to_hbm [thread:$0]  %s947, 128, %s2, [#allocation4]
    $region21: #{tpu_custom_call.1} parent=1 // pred_fallthru
      _
    // Predicated region
    $region22: #{tpu_custom_call.1} parent=1 // pred_check
      _
    $region23: #{tpu_custom_call.1} parent=1 // pred_check_branch
      %951 = sbr.rel (0) target = $region25
    $region24: #{tpu_custom_call.1} parent=1 // pred_region
      %952 = dma.done [#allocation4], 128
    $region25: #{tpu_custom_call.1} parent=1 // pred_fallthru
      _
    %953 = vsyncpa [#allocation3], 1
    %954 = vsyncpa [#allocation6], 1
    %955 = vsyncpa [#allocation4], 1

</llo_original>
